<compile_context>
chip_gen: v5e
topology: v5e:2x2
jax: 0.10.0
libtpu: 0.0.40
codegen_flags: <defaults>
</compile_context>

<pallas_src>
import functools

import jax
import jax.numpy as jnp
from jax import lax
from jax.experimental import pallas as pl
from jax.experimental.pallas import tpu as pltpu


# --------------------------------------------------------------------------- #
# Fused kernel: one grid step == one batch element; everything stays in vregs.
# Layout: channels on sublanes, flattened spatial (H*W) on lanes.
# --------------------------------------------------------------------------- #
def cgb_fused_kernel(x_ref, w1_ref, p1_ref, wloc_ref, wsur_ref, ploc_ref,
                     psur_ref, fc1w_ref, fc1b_ref, fc2w_ref, fc2b_ref,
                     o_ref, *, H, W, n, d, add):
    HW = H * W
    f32 = jnp.float32
    x = x_ref[...].astype(f32)                          # (nIn, HW)

    # -- conv1x1 (BN1 scale pre-folded into w1) + bias + PReLU --------------- #
    y = jnp.dot(w1_ref[...], x, preferred_element_type=f32)     # (n, HW)
    y = y + p1_ref[:, 0:1]
    y = jnp.where(y >= 0, y, p1_ref[:, 1:2] * y)

    # -- depthwise 3x3 convs via static lane shifts of a zero-padded value --- #
    # Pad once along the flattened-spatial (lane) axis; every tap is then a
    # static slice.  Row over/underflow lands in the zero pad; only column
    # wrap-around needs an explicit mask.
    P = d * (W + 1)                                      # >= max |tap offset|
    zpad = jnp.zeros((n, P), f32)
    yp = jnp.concatenate([zpad, y, zpad], axis=1)        # (n, HW + 2P)

    col = lax.broadcasted_iota(jnp.int32, (1, HW), 1) % W
    mask_cache = {}

    def col_mask(dx):
        if dx not in mask_cache:
            mask_cache[dx] = jnp.logical_and(col + dx >= 0, col + dx < W)
        return mask_cache[dx]

    def depthwise(w_ref, dil):
        acc = jnp.zeros((n, HW), f32)
        for ky in range(3):
            for kx in range(3):
                t = ky * 3 + kx
                dy, dx = dil * (ky - 1), dil * (kx - 1)
                off = dy * W + dx
                tap = yp[:, P + off:P + off + HW]        # (n, HW)
                if dx != 0:
                    tap = jnp.where(col_mask(dx), tap, 0.0)
                acc = acc + tap * w_ref[:, t:t + 1]
        return acc

    loc = depthwise(wloc_ref, 1)                         # BN2 scale folded in
    sur = depthwise(wsur_ref, d)

    # -- BN2 bias + PReLU (per concatenated-channel half) -------------------- #
    loc = loc + ploc_ref[:, 0:1]
    loc = jnp.where(loc >= 0, loc, ploc_ref[:, 1:2] * loc)
    sur = sur + psur_ref[:, 0:1]
    sur = jnp.where(sur >= 0, sur, psur_ref[:, 1:2] * sur)

    # -- FGlo: lane-reduce pool -> two tiny FCs on VPU/XLU -> sigmoid gate ---- #
    inv_hw = 1.0 / float(HW)
    pool = jnp.concatenate(
        [jnp.sum(loc, axis=1, keepdims=True),
         jnp.sum(sur, axis=1, keepdims=True)], axis=0) * inv_hw  # (nOut, 1)
    h = jnp.sum(pool * fc1w_ref[...], axis=0, keepdims=True) + fc1b_ref[...]
    h = jnp.maximum(h, 0.0)                                       # (1, hid)
    g = jnp.sum(fc2w_ref[...] * h, axis=1, keepdims=True) + fc2b_ref[...]
    g = jax.nn.sigmoid(g)                                         # (nOut, 1)

    out_loc = loc * g[:n, :]
    out_sur = sur * g[n:, :]
    if add:                                              # residual (nIn==nOut)
        out_loc = out_loc + x[:n, :]
        out_sur = out_sur + x[n:, :]

    # Two aligned, lane-dense slab stores (no lane concat, no masked vst).
    odt = o_ref.dtype
    o_ref[0:n, :] = out_loc.astype(odt)
    o_ref[n:2 * n, :] = out_sur.astype(odt)


# --------------------------------------------------------------------------- #
# Wrapper: NCHW -> (B, C, H*W) (free reshape), BN folding, pallas_call.
# --------------------------------------------------------------------------- #
def context_guided_forward(x_nchw, params, *, dilation_rate=2, add=True,
                           eps=1e-3, io_dtype=jnp.float32):
    B, nIn, H, W = x_nchw.shape
    n = params["w_conv1"].shape[0]
    nOut = 2 * n
    hid = params["fc1_w"].shape[0]
    d = max(1, int(dilation_rate))
    HW = H * W
    do_add = bool(add)
    if do_add and nIn != nOut:
        raise ValueError("residual add requires nIn == nOut")

    # ---- fold BatchNorm (inference mode) into per-channel scale/bias ------- #
    def bn_fold(gamma, beta, mean, var):
        s = gamma * lax.rsqrt(var + eps)
        return s, beta - mean * s

    s1, b1 = bn_fold(params["bn1_gamma"], params["bn1_beta"],
                     params["bn1_mean"], params["bn1_var"])
    s2, b2 = bn_fold(params["bn2_gamma"], params["bn2_beta"],
                     params["bn2_mean"], params["bn2_var"])
    a1 = params["prelu1_alpha"]
    a2 = params["prelu2_alpha"]

    # conv1x1 weight with BN1 scale folded: (n, nIn)
    w1_k = params["w_conv1"].reshape(n, nIn) * s1[:, None]
    p1 = jnp.stack([b1, a1], axis=1)                                # (n, 2)
    # depthwise tap weights with BN2 scale folded: (n, 9), col = ky*3+kx
    wloc_k = params["w_loc"][:, 0].reshape(n, 9) * s2[:n, None]
    wsur_k = params["w_sur"][:, 0].reshape(n, 9) * s2[n:, None]
    ploc = jnp.stack([b2[:n], a2[:n]], axis=1)                      # (n, 2)
    psur = jnp.stack([b2[n:], a2[n:]], axis=1)                      # (n, 2)
    fc1w_k = params["fc1_w"].T                                      # (nOut, hid)
    fc1b_k = params["fc1_b"].reshape(1, hid)
    fc2w_k = params["fc2_w"]                                        # (nOut, hid)
    fc2b_k = params["fc2_b"].reshape(nOut, 1)

    # NCHW is already channels-on-sublane / spatial-on-lane after a reshape.
    x2 = x_nchw.reshape(B, nIn, HW).astype(io_dtype)

    io_b = jnp.dtype(io_dtype).itemsize
    param_bytes = 4 * (n * nIn + 24 * n + 2 * nOut * hid + hid + nOut)
    # per-step footprint: double-buffered in/out blocks + params + headroom
    vmem_est = 2 * io_b * HW * (nIn + nOut) + 2 * param_bytes + (2 << 20)
    try:
        vmem_cap = int(getattr(pltpu.get_tpu_info(), "vmem_capacity_bytes",
                               64 << 20))
    except Exception:
        vmem_cap = 64 << 20                      # conservative (v7x per-TC)
    vmem_limit = int(min(vmem_cap, max(vmem_est, 16 << 20)))

    flops = B * (2 * HW * nIn * n                # conv1x1
                 + 2 * 2 * 9 * HW * n            # two depthwise 3x3
                 + 10 * HW * nOut                # BN/PReLU/gate/residual
                 + 2 * 2 * nOut * hid)           # FGlo FCs
    bytes_acc = io_b * B * HW * (nIn + nOut) + param_bytes

    kernel = functools.partial(cgb_fused_kernel, H=H, W=W, n=n, d=d,
                               add=do_add)

    out = pl.pallas_call(
        kernel,
        grid=(B,),
        out_shape=jax.ShapeDtypeStruct((B, nOut, HW), io_dtype),
        in_specs=[
            pl.BlockSpec((None, nIn, HW), lambda b: (b, 0, 0)),
            pl.BlockSpec((n, nIn), lambda b: (0, 0)),
            pl.BlockSpec((n, 2), lambda b: (0, 0)),
            pl.BlockSpec((n, 9), lambda b: (0, 0)),
            pl.BlockSpec((n, 9), lambda b: (0, 0)),
            pl.BlockSpec((n, 2), lambda b: (0, 0)),
            pl.BlockSpec((n, 2), lambda b: (0, 0)),
            pl.BlockSpec((nOut, hid), lambda b: (0, 0)),
            pl.BlockSpec((1, hid), lambda b: (0, 0)),
            pl.BlockSpec((nOut, hid), lambda b: (0, 0)),
            pl.BlockSpec((nOut, 1), lambda b: (0, 0)),
        ],
        out_specs=pl.BlockSpec((None, nOut, HW), lambda b: (b, 0, 0)),
        compiler_params=pltpu.CompilerParams(
            dimension_semantics=("parallel",),
            vmem_limit_bytes=vmem_limit),
        cost_estimate=pl.CostEstimate(flops=flops, transcendentals=B * nOut,
                                      bytes_accessed=bytes_acc),
        input_output_aliases=({0: 0} if nIn == nOut else {}),
    )(x2, w1_k, p1, wloc_k, wsur_k, ploc, psur, fc1w_k, fc1b_k, fc2w_k, fc2b_k)

    return out.reshape(B, nOut, H, W)


# --------------------------------------------------------------------------- #
# Deterministic parameters mirroring the PyTorch module's shapes (eval mode).
# --------------------------------------------------------------------------- #
def init_params(key, nIn, nOut, dilation_rate=2, reduction=16):
    n = nOut // 2
    hid = max(1, nOut // reduction)
    ks = jax.random.split(key, 17)

    def nrm(k, shape, scale):
        return scale * jax.random.normal(k, shape, jnp.float32)

    return {
        # ConvBNPReLU(nIn, n, 1)
        "w_conv1": nrm(ks[0], (n, nIn, 1, 1), 1.0 / float(nIn) ** 0.5),
        "bn1_gamma": 1.0 + nrm(ks[1], (n,), 0.1),
        "bn1_beta": nrm(ks[2], (n,), 0.1),
        "bn1_mean": nrm(ks[3], (n,), 0.1),
        "bn1_var": 1.0 + 0.2 * jax.random.uniform(ks[4], (n,), jnp.float32),
        "prelu1_alpha": 0.25 + nrm(ks[5], (n,), 0.05),
        # F_loc / F_sur depthwise 3x3 weights (n, 1, 3, 3)
        "w_loc": nrm(ks[6], (n, 1, 3, 3), 1.0 / 3.0),
        "w_sur": nrm(ks[7], (n, 1, 3, 3), 1.0 / 3.0),
        # BNPReLU(nOut)
        "bn2_gamma": 1.0 + nrm(ks[8], (nOut,), 0.1),
        "bn2_beta": nrm(ks[9], (nOut,), 0.1),
        "bn2_mean": nrm(ks[10], (nOut,), 0.1),
        "bn2_var": 1.0 + 0.2 * jax.random.uniform(ks[11], (nOut,), jnp.float32),
        "prelu2_alpha": 0.25 + nrm(ks[12], (nOut,), 0.05),
        # FGlo: Linear(nOut, hid), ReLU, Linear(hid, nOut), Sigmoid
        "fc1_w": nrm(ks[13], (hid, nOut), 1.0 / float(nOut) ** 0.5),
        "fc1_b": nrm(ks[14], (hid,), 0.05),
        "fc2_w": nrm(ks[15], (nOut, hid), 1.0 / float(hid) ** 0.5),
        "fc2_b": nrm(ks[16], (nOut,), 0.05),
    }


# --------------------------------------------------------------------------- #
# Pure-JAX reference mirroring the PyTorch forward (eval-mode BN).
# --------------------------------------------------------------------------- #
def reference_forward(x, p, *, dilation_rate=2, add=True, eps=1e-3):
    dn = ("NCHW", "OIHW", "NCHW")
    n = p["w_conv1"].shape[0]
    d = max(1, int(dilation_rate))

    def bn(v, g, b, m, var):
        inv = lax.rsqrt(var + eps)
        return (v - m[None, :, None, None]) * (g * inv)[None, :, None, None] \
            + b[None, :, None, None]

    def prelu(v, a):
        a = a[None, :, None, None]
        return jnp.where(v >= 0, v, a * v)

    o = lax.conv_general_dilated(x, p["w_conv1"], (1, 1), "VALID",
                                 dimension_numbers=dn)
    o = prelu(bn(o, p["bn1_gamma"], p["bn1_beta"], p["bn1_mean"], p["bn1_var"]),
              p["prelu1_alpha"])
    loc = lax.conv_general_dilated(o, p["w_loc"], (1, 1), ((1, 1), (1, 1)),
                                   dimension_numbers=dn, feature_group_count=n)
    sur = lax.conv_general_dilated(o, p["w_sur"], (1, 1), ((d, d), (d, d)),
                                   rhs_dilation=(d, d), dimension_numbers=dn,
                                   feature_group_count=n)
    joi = jnp.concatenate([loc, sur], axis=1)
    joi = prelu(bn(joi, p["bn2_gamma"], p["bn2_beta"], p["bn2_mean"],
                   p["bn2_var"]), p["prelu2_alpha"])
    pool = jnp.mean(joi, axis=(2, 3))                          # (B, nOut)
    h = jnp.maximum(pool @ p["fc1_w"].T + p["fc1_b"], 0.0)
    gate = jax.nn.sigmoid(h @ p["fc2_w"].T + p["fc2_b"])
    out = joi * gate[:, :, None, None]
    if add:
        out = out + x
    return out


if __name__ == "__main__":
    B, nIn, H, W = 2, 32, 16, 16
    nOut, dilation_rate, reduction = 32, 2, 16

    key = jax.random.PRNGKey(0)
    kx, kp = jax.random.split(key)
    x = jax.random.normal(kx, (B, nIn, H, W), jnp.float32)
    params = init_params(kp, nIn, nOut, dilation_rate, reduction)

    fwd = jax.jit(functools.partial(context_guided_forward,
                                    dilation_rate=dilation_rate, add=True))
    out = jax.block_until_ready(fwd(x, params))

    ref = jax.block_until_ready(
        reference_forward(x, params, dilation_rate=dilation_rate, add=True))

    assert out.shape == (B, nOut, H, W)
    err = float(jnp.max(jnp.abs(out - ref)))
    if err < 2e-3:
        print("KERNEL_OK")
    else:
        print(f"MISMATCH max_abs_err={err}")
</pallas_src>

<mosaic_0001>
module attributes {stable_mosaic.version = 11 : i64} {
  func.func @cgb_fused_kernel(%arg0: i32, %arg1: memref<1x32x256xf32, #tpu.memory_space<vmem>>, %arg2: memref<16x32xf32, #tpu.memory_space<vmem>>, %arg3: memref<16x2xf32, #tpu.memory_space<vmem>>, %arg4: memref<16x9xf32, #tpu.memory_space<vmem>>, %arg5: memref<16x9xf32, #tpu.memory_space<vmem>>, %arg6: memref<16x2xf32, #tpu.memory_space<vmem>>, %arg7: memref<16x2xf32, #tpu.memory_space<vmem>>, %arg8: memref<32x2xf32, #tpu.memory_space<vmem>>, %arg9: memref<1x2xf32, #tpu.memory_space<vmem>>, %arg10: memref<32x2xf32, #tpu.memory_space<vmem>>, %arg11: memref<32x1xf32, #tpu.memory_space<vmem>>, %arg12: memref<1x32x256xf32, #tpu.memory_space<vmem>>) attributes {dimension_semantics = [#tpu.dimension_semantics<parallel>], iteration_bounds = array<i64: 2>, scalar_prefetch = 0 : i64, scratch_operands = 0 : i64, tpu.core_type = #tpu.core_type<tc>, window_params = [{transform_indices = @transform_0, window_bounds = array<i64: 1, 32, 256>}, {pipeline_mode = #tpu.pipeline_mode<synchronous>, transform_indices = @transform_1, window_bounds = array<i64: 16, 32>}, {pipeline_mode = #tpu.pipeline_mode<synchronous>, transform_indices = @transform_2, window_bounds = array<i64: 16, 2>}, {pipeline_mode = #tpu.pipeline_mode<synchronous>, transform_indices = @transform_3, window_bounds = array<i64: 16, 9>}, {pipeline_mode = #tpu.pipeline_mode<synchronous>, transform_indices = @transform_4, window_bounds = array<i64: 16, 9>}, {pipeline_mode = #tpu.pipeline_mode<synchronous>, transform_indices = @transform_5, window_bounds = array<i64: 16, 2>}, {pipeline_mode = #tpu.pipeline_mode<synchronous>, transform_indices = @transform_6, window_bounds = array<i64: 16, 2>}, {pipeline_mode = #tpu.pipeline_mode<synchronous>, transform_indices = @transform_7, window_bounds = array<i64: 32, 2>}, {pipeline_mode = #tpu.pipeline_mode<synchronous>, transform_indices = @transform_8, window_bounds = array<i64: 1, 2>}, {pipeline_mode = #tpu.pipeline_mode<synchronous>, transform_indices = @transform_9, window_bounds = array<i64: 32, 2>}, {pipeline_mode = #tpu.pipeline_mode<synchronous>, transform_indices = @transform_10, window_bounds = array<i64: 32, 1>}, {transform_indices = @transform_11, window_bounds = array<i64: 1, 32, 256>}]} {
    %c0 = arith.constant 0 : index
    %c0_0 = arith.constant 0 : index
    %c0_1 = arith.constant 0 : index
    %0 = vector.load %arg1[%c0, %c0_0, %c0_1] : memref<1x32x256xf32, #tpu.memory_space<vmem>>, vector<1x32x256xf32>
    %1 = vector.shape_cast %0 : vector<1x32x256xf32> to vector<32x256xf32>
    %c0_2 = arith.constant 0 : index
    %c0_3 = arith.constant 0 : index
    %2 = vector.load %arg2[%c0_2, %c0_3] : memref<16x32xf32, #tpu.memory_space<vmem>>, vector<16x32xf32>
    %cst = arith.constant dense<0.000000e+00> : vector<16x256xf32>
    %3 = tpu.matmul %2, %1, %cst {dimension_numbers = #tpu.dot_dimension_numbers<[1], [0], [0], [1], [0, 0, 1, 1], [], []>} : vector<16x32xf32>, vector<32x256xf32>, vector<16x256xf32> -> vector<16x256xf32>
    %c0_4 = arith.constant 0 : index
    %c0_5 = arith.constant 0 : index
    %4 = vector.load %arg3[%c0_4, %c0_5] : memref<16x2xf32, #tpu.memory_space<vmem>>, vector<16x1xf32>
    %5 = vector.broadcast %4 : vector<16x1xf32> to vector<16x256xf32>
    %6 = arith.addf %3, %5 : vector<16x256xf32>
    %cst_6 = arith.constant 0.000000e+00 : f32
    %7 = vector.broadcast %cst_6 : f32 to vector<16x256xf32>
    %8 = arith.cmpf oge, %6, %7 : vector<16x256xf32>
    %c0_7 = arith.constant 0 : index
    %c1 = arith.constant 1 : index
    %9 = vector.load %arg3[%c0_7, %c1] : memref<16x2xf32, #tpu.memory_space<vmem>>, vector<16x1xf32>
    %10 = vector.broadcast %9 : vector<16x1xf32> to vector<16x256xf32>
    %11 = arith.mulf %10, %6 : vector<16x256xf32>
    %12 = arith.select %8, %6, %11 : vector<16x256xi1>, vector<16x256xf32>
    %cst_8 = arith.constant 0.000000e+00 : f32
    %13 = vector.broadcast %cst_8 : f32 to vector<16x34xf32>
    %14 = tpu.concatenate %13, %12, %13 in 1 : vector<16x34xf32>, vector<16x256xf32>, vector<16x34xf32> -> vector<16x324xf32>
    %15 = tpu.iota {dimensions = array<i32: 1>} : vector<1x256xi32>
    %c16_i32 = arith.constant 16 : i32
    %c0_i32 = arith.constant 0 : i32
    %16 = arith.cmpi eq, %c16_i32, %c0_i32 : i32
    %c1_i32 = arith.constant 1 : i32
    %17 = arith.select %16, %c1_i32, %c16_i32 : i32
    %18 = vector.broadcast %17 : i32 to vector<1x256xi32>
    %19 = arith.remsi %15, %18 : vector<1x256xi32>
    %c0_i32_9 = arith.constant 0 : i32
    %20 = vector.broadcast %c0_i32_9 : i32 to vector<1x256xi32>
    %21 = arith.cmpi ne, %19, %20 : vector<1x256xi32>
    %c0_i32_10 = arith.constant 0 : i32
    %22 = vector.broadcast %c0_i32_10 : i32 to vector<1x256xi32>
    %23 = arith.cmpi slt, %19, %22 : vector<1x256xi32>
    %c0_i32_11 = arith.constant 0 : i32
    %24 = arith.cmpi slt, %17, %c0_i32_11 : i32
    %25 = vector.broadcast %24 : i1 to vector<1x256xi1>
    %26 = vector.broadcast %25 : vector<1x256xi1> to vector<1x256xi1>
    %27 = arith.xori %23, %26 : vector<1x256xi1>
    %28 = arith.andi %27, %21 : vector<1x256xi1>
    %29 = vector.broadcast %17 : i32 to vector<1x256xi32>
    %30 = arith.addi %19, %29 : vector<1x256xi32>
    %31 = arith.select %28, %30, %19 : vector<1x256xi1>, vector<1x256xi32>
    %cst_12 = arith.constant 0.000000e+00 : f32
    %32 = vector.broadcast %cst_12 : f32 to vector<16x256xf32>
    %33 = vector.extract_strided_slice %14 {offsets = [0, 17], sizes = [16, 256], strides = [1, 1]} : vector<16x324xf32> to vector<16x256xf32>
    %c-1_i32 = arith.constant -1 : i32
    %34 = vector.broadcast %c-1_i32 : i32 to vector<1x256xi32>
    %35 = arith.addi %31, %34 : vector<1x256xi32>
    %c0_i32_13 = arith.constant 0 : i32
    %36 = vector.broadcast %c0_i32_13 : i32 to vector<1x256xi32>
    %37 = arith.cmpi sge, %35, %36 : vector<1x256xi32>
    %c-1_i32_14 = arith.constant -1 : i32
    %38 = vector.broadcast %c-1_i32_14 : i32 to vector<1x256xi32>
    %39 = arith.addi %31, %38 : vector<1x256xi32>
    %c16_i32_15 = arith.constant 16 : i32
    %40 = vector.broadcast %c16_i32_15 : i32 to vector<1x256xi32>
    %41 = arith.cmpi slt, %39, %40 : vector<1x256xi32>
    %42 = arith.andi %37, %41 : vector<1x256xi1>
    %cst_16 = arith.constant 0.000000e+00 : f32
    %43 = vector.shape_cast %42 : vector<1x256xi1> to vector<1x256xi1>
    %44 = vector.broadcast %43 : vector<1x256xi1> to vector<16x256xi1>
    %45 = vector.broadcast %cst_16 : f32 to vector<16x256xf32>
    %46 = arith.select %44, %33, %45 : vector<16x256xi1>, vector<16x256xf32>
    %c0_17 = arith.constant 0 : index
    %c0_18 = arith.constant 0 : index
    %47 = vector.load %arg4[%c0_17, %c0_18] : memref<16x9xf32, #tpu.memory_space<vmem>>, vector<16x1xf32>
    %48 = vector.broadcast %47 : vector<16x1xf32> to vector<16x256xf32>
    %49 = arith.mulf %46, %48 : vector<16x256xf32>
    %50 = arith.addf %32, %49 : vector<16x256xf32>
    %51 = vector.extract_strided_slice %14 {offsets = [0, 18], sizes = [16, 256], strides = [1, 1]} : vector<16x324xf32> to vector<16x256xf32>
    %c0_19 = arith.constant 0 : index
    %c1_20 = arith.constant 1 : index
    %52 = vector.load %arg4[%c0_19, %c1_20] : memref<16x9xf32, #tpu.memory_space<vmem>>, vector<16x1xf32>
    %53 = vector.broadcast %52 : vector<16x1xf32> to vector<16x256xf32>
    %54 = arith.mulf %51, %53 : vector<16x256xf32>
    %55 = arith.addf %50, %54 : vector<16x256xf32>
    %56 = vector.extract_strided_slice %14 {offsets = [0, 19], sizes = [16, 256], strides = [1, 1]} : vector<16x324xf32> to vector<16x256xf32>
    %c1_i32_21 = arith.constant 1 : i32
    %57 = vector.broadcast %c1_i32_21 : i32 to vector<1x256xi32>
    %58 = arith.addi %31, %57 : vector<1x256xi32>
    %c0_i32_22 = arith.constant 0 : i32
    %59 = vector.broadcast %c0_i32_22 : i32 to vector<1x256xi32>
    %60 = arith.cmpi sge, %58, %59 : vector<1x256xi32>
    %c1_i32_23 = arith.constant 1 : i32
    %61 = vector.broadcast %c1_i32_23 : i32 to vector<1x256xi32>
    %62 = arith.addi %31, %61 : vector<1x256xi32>
    %c16_i32_24 = arith.constant 16 : i32
    %63 = vector.broadcast %c16_i32_24 : i32 to vector<1x256xi32>
    %64 = arith.cmpi slt, %62, %63 : vector<1x256xi32>
    %65 = arith.andi %60, %64 : vector<1x256xi1>
    %cst_25 = arith.constant 0.000000e+00 : f32
    %66 = vector.shape_cast %65 : vector<1x256xi1> to vector<1x256xi1>
    %67 = vector.broadcast %66 : vector<1x256xi1> to vector<16x256xi1>
    %68 = vector.broadcast %cst_25 : f32 to vector<16x256xf32>
    %69 = arith.select %67, %56, %68 : vector<16x256xi1>, vector<16x256xf32>
    %c0_26 = arith.constant 0 : index
    %c2 = arith.constant 2 : index
    %70 = vector.load %arg4[%c0_26, %c2] : memref<16x9xf32, #tpu.memory_space<vmem>>, vector<16x1xf32>
    %71 = vector.broadcast %70 : vector<16x1xf32> to vector<16x256xf32>
    %72 = arith.mulf %69, %71 : vector<16x256xf32>
    %73 = arith.addf %55, %72 : vector<16x256xf32>
    %74 = vector.extract_strided_slice %14 {offsets = [0, 33], sizes = [16, 256], strides = [1, 1]} : vector<16x324xf32> to vector<16x256xf32>
    %cst_27 = arith.constant 0.000000e+00 : f32
    %75 = vector.shape_cast %42 : vector<1x256xi1> to vector<1x256xi1>
    %76 = vector.broadcast %75 : vector<1x256xi1> to vector<16x256xi1>
    %77 = vector.broadcast %cst_27 : f32 to vector<16x256xf32>
    %78 = arith.select %76, %74, %77 : vector<16x256xi1>, vector<16x256xf32>
    %c0_28 = arith.constant 0 : index
    %c3 = arith.constant 3 : index
    %79 = vector.load %arg4[%c0_28, %c3] : memref<16x9xf32, #tpu.memory_space<vmem>>, vector<16x1xf32>
    %80 = vector.broadcast %79 : vector<16x1xf32> to vector<16x256xf32>
    %81 = arith.mulf %78, %80 : vector<16x256xf32>
    %82 = arith.addf %73, %81 : vector<16x256xf32>
    %83 = vector.extract_strided_slice %14 {offsets = [0, 34], sizes = [16, 256], strides = [1, 1]} : vector<16x324xf32> to vector<16x256xf32>
    %c0_29 = arith.constant 0 : index
    %c4 = arith.constant 4 : index
    %84 = vector.load %arg4[%c0_29, %c4] : memref<16x9xf32, #tpu.memory_space<vmem>>, vector<16x1xf32>
    %85 = vector.broadcast %84 : vector<16x1xf32> to vector<16x256xf32>
    %86 = arith.mulf %83, %85 : vector<16x256xf32>
    %87 = arith.addf %82, %86 : vector<16x256xf32>
    %88 = vector.extract_strided_slice %14 {offsets = [0, 35], sizes = [16, 256], strides = [1, 1]} : vector<16x324xf32> to vector<16x256xf32>
    %cst_30 = arith.constant 0.000000e+00 : f32
    %89 = vector.shape_cast %65 : vector<1x256xi1> to vector<1x256xi1>
    %90 = vector.broadcast %89 : vector<1x256xi1> to vector<16x256xi1>
    %91 = vector.broadcast %cst_30 : f32 to vector<16x256xf32>
    %92 = arith.select %90, %88, %91 : vector<16x256xi1>, vector<16x256xf32>
    %c0_31 = arith.constant 0 : index
    %c5 = arith.constant 5 : index
    %93 = vector.load %arg4[%c0_31, %c5] : memref<16x9xf32, #tpu.memory_space<vmem>>, vector<16x1xf32>
    %94 = vector.broadcast %93 : vector<16x1xf32> to vector<16x256xf32>
    %95 = arith.mulf %92, %94 : vector<16x256xf32>
    %96 = arith.addf %87, %95 : vector<16x256xf32>
    %97 = vector.extract_strided_slice %14 {offsets = [0, 49], sizes = [16, 256], strides = [1, 1]} : vector<16x324xf32> to vector<16x256xf32>
    %cst_32 = arith.constant 0.000000e+00 : f32
    %98 = vector.shape_cast %42 : vector<1x256xi1> to vector<1x256xi1>
    %99 = vector.broadcast %98 : vector<1x256xi1> to vector<16x256xi1>
    %100 = vector.broadcast %cst_32 : f32 to vector<16x256xf32>
    %101 = arith.select %99, %97, %100 : vector<16x256xi1>, vector<16x256xf32>
    %c0_33 = arith.constant 0 : index
    %c6 = arith.constant 6 : index
    %102 = vector.load %arg4[%c0_33, %c6] : memref<16x9xf32, #tpu.memory_space<vmem>>, vector<16x1xf32>
    %103 = vector.broadcast %102 : vector<16x1xf32> to vector<16x256xf32>
    %104 = arith.mulf %101, %103 : vector<16x256xf32>
    %105 = arith.addf %96, %104 : vector<16x256xf32>
    %106 = vector.extract_strided_slice %14 {offsets = [0, 50], sizes = [16, 256], strides = [1, 1]} : vector<16x324xf32> to vector<16x256xf32>
    %c0_34 = arith.constant 0 : index
    %c7 = arith.constant 7 : index
    %107 = vector.load %arg4[%c0_34, %c7] : memref<16x9xf32, #tpu.memory_space<vmem>>, vector<16x1xf32>
    %108 = vector.broadcast %107 : vector<16x1xf32> to vector<16x256xf32>
    %109 = arith.mulf %106, %108 : vector<16x256xf32>
    %110 = arith.addf %105, %109 : vector<16x256xf32>
    %111 = vector.extract_strided_slice %14 {offsets = [0, 51], sizes = [16, 256], strides = [1, 1]} : vector<16x324xf32> to vector<16x256xf32>
    %cst_35 = arith.constant 0.000000e+00 : f32
    %112 = vector.shape_cast %65 : vector<1x256xi1> to vector<1x256xi1>
    %113 = vector.broadcast %112 : vector<1x256xi1> to vector<16x256xi1>
    %114 = vector.broadcast %cst_35 : f32 to vector<16x256xf32>
    %115 = arith.select %113, %111, %114 : vector<16x256xi1>, vector<16x256xf32>
    %c0_36 = arith.constant 0 : index
    %c8 = arith.constant 8 : index
    %116 = vector.load %arg4[%c0_36, %c8] : memref<16x9xf32, #tpu.memory_space<vmem>>, vector<16x1xf32>
    %117 = vector.broadcast %116 : vector<16x1xf32> to vector<16x256xf32>
    %118 = arith.mulf %115, %117 : vector<16x256xf32>
    %119 = arith.addf %110, %118 : vector<16x256xf32>
    %cst_37 = arith.constant 0.000000e+00 : f32
    %120 = vector.broadcast %cst_37 : f32 to vector<16x256xf32>
    %121 = vector.extract_strided_slice %14 {offsets = [0, 0], sizes = [16, 256], strides = [1, 1]} : vector<16x324xf32> to vector<16x256xf32>
    %c-2_i32 = arith.constant -2 : i32
    %122 = vector.broadcast %c-2_i32 : i32 to vector<1x256xi32>
    %123 = arith.addi %31, %122 : vector<1x256xi32>
    %c0_i32_38 = arith.constant 0 : i32
    %124 = vector.broadcast %c0_i32_38 : i32 to vector<1x256xi32>
    %125 = arith.cmpi sge, %123, %124 : vector<1x256xi32>
    %c-2_i32_39 = arith.constant -2 : i32
    %126 = vector.broadcast %c-2_i32_39 : i32 to vector<1x256xi32>
    %127 = arith.addi %31, %126 : vector<1x256xi32>
    %c16_i32_40 = arith.constant 16 : i32
    %128 = vector.broadcast %c16_i32_40 : i32 to vector<1x256xi32>
    %129 = arith.cmpi slt, %127, %128 : vector<1x256xi32>
    %130 = arith.andi %125, %129 : vector<1x256xi1>
    %cst_41 = arith.constant 0.000000e+00 : f32
    %131 = vector.shape_cast %130 : vector<1x256xi1> to vector<1x256xi1>
    %132 = vector.broadcast %131 : vector<1x256xi1> to vector<16x256xi1>
    %133 = vector.broadcast %cst_41 : f32 to vector<16x256xf32>
    %134 = arith.select %132, %121, %133 : vector<16x256xi1>, vector<16x256xf32>
    %c0_42 = arith.constant 0 : index
    %c0_43 = arith.constant 0 : index
    %135 = vector.load %arg5[%c0_42, %c0_43] : memref<16x9xf32, #tpu.memory_space<vmem>>, vector<16x1xf32>
    %136 = vector.broadcast %135 : vector<16x1xf32> to vector<16x256xf32>
    %137 = arith.mulf %134, %136 : vector<16x256xf32>
    %138 = arith.addf %120, %137 : vector<16x256xf32>
    %139 = vector.extract_strided_slice %14 {offsets = [0, 2], sizes = [16, 256], strides = [1, 1]} : vector<16x324xf32> to vector<16x256xf32>
    %c0_44 = arith.constant 0 : index
    %c1_45 = arith.constant 1 : index
    %140 = vector.load %arg5[%c0_44, %c1_45] : memref<16x9xf32, #tpu.memory_space<vmem>>, vector<16x1xf32>
    %141 = vector.broadcast %140 : vector<16x1xf32> to vector<16x256xf32>
    %142 = arith.mulf %139, %141 : vector<16x256xf32>
    %143 = arith.addf %138, %142 : vector<16x256xf32>
    %144 = vector.extract_strided_slice %14 {offsets = [0, 4], sizes = [16, 256], strides = [1, 1]} : vector<16x324xf32> to vector<16x256xf32>
    %c2_i32 = arith.constant 2 : i32
    %145 = vector.broadcast %c2_i32 : i32 to vector<1x256xi32>
    %146 = arith.addi %31, %145 : vector<1x256xi32>
    %c0_i32_46 = arith.constant 0 : i32
    %147 = vector.broadcast %c0_i32_46 : i32 to vector<1x256xi32>
    %148 = arith.cmpi sge, %146, %147 : vector<1x256xi32>
    %c2_i32_47 = arith.constant 2 : i32
    %149 = vector.broadcast %c2_i32_47 : i32 to vector<1x256xi32>
    %150 = arith.addi %31, %149 : vector<1x256xi32>
    %c16_i32_48 = arith.constant 16 : i32
    %151 = vector.broadcast %c16_i32_48 : i32 to vector<1x256xi32>
    %152 = arith.cmpi slt, %150, %151 : vector<1x256xi32>
    %153 = arith.andi %148, %152 : vector<1x256xi1>
    %cst_49 = arith.constant 0.000000e+00 : f32
    %154 = vector.shape_cast %153 : vector<1x256xi1> to vector<1x256xi1>
    %155 = vector.broadcast %154 : vector<1x256xi1> to vector<16x256xi1>
    %156 = vector.broadcast %cst_49 : f32 to vector<16x256xf32>
    %157 = arith.select %155, %144, %156 : vector<16x256xi1>, vector<16x256xf32>
    %c0_50 = arith.constant 0 : index
    %c2_51 = arith.constant 2 : index
    %158 = vector.load %arg5[%c0_50, %c2_51] : memref<16x9xf32, #tpu.memory_space<vmem>>, vector<16x1xf32>
    %159 = vector.broadcast %158 : vector<16x1xf32> to vector<16x256xf32>
    %160 = arith.mulf %157, %159 : vector<16x256xf32>
    %161 = arith.addf %143, %160 : vector<16x256xf32>
    %162 = vector.extract_strided_slice %14 {offsets = [0, 32], sizes = [16, 256], strides = [1, 1]} : vector<16x324xf32> to vector<16x256xf32>
    %cst_52 = arith.constant 0.000000e+00 : f32
    %163 = vector.shape_cast %130 : vector<1x256xi1> to vector<1x256xi1>
    %164 = vector.broadcast %163 : vector<1x256xi1> to vector<16x256xi1>
    %165 = vector.broadcast %cst_52 : f32 to vector<16x256xf32>
    %166 = arith.select %164, %162, %165 : vector<16x256xi1>, vector<16x256xf32>
    %c0_53 = arith.constant 0 : index
    %c3_54 = arith.constant 3 : index
    %167 = vector.load %arg5[%c0_53, %c3_54] : memref<16x9xf32, #tpu.memory_space<vmem>>, vector<16x1xf32>
    %168 = vector.broadcast %167 : vector<16x1xf32> to vector<16x256xf32>
    %169 = arith.mulf %166, %168 : vector<16x256xf32>
    %170 = arith.addf %161, %169 : vector<16x256xf32>
    %171 = vector.extract_strided_slice %14 {offsets = [0, 34], sizes = [16, 256], strides = [1, 1]} : vector<16x324xf32> to vector<16x256xf32>
    %c0_55 = arith.constant 0 : index
    %c4_56 = arith.constant 4 : index
    %172 = vector.load %arg5[%c0_55, %c4_56] : memref<16x9xf32, #tpu.memory_space<vmem>>, vector<16x1xf32>
    %173 = vector.broadcast %172 : vector<16x1xf32> to vector<16x256xf32>
    %174 = arith.mulf %171, %173 : vector<16x256xf32>
    %175 = arith.addf %170, %174 : vector<16x256xf32>
    %176 = vector.extract_strided_slice %14 {offsets = [0, 36], sizes = [16, 256], strides = [1, 1]} : vector<16x324xf32> to vector<16x256xf32>
    %cst_57 = arith.constant 0.000000e+00 : f32
    %177 = vector.shape_cast %153 : vector<1x256xi1> to vector<1x256xi1>
    %178 = vector.broadcast %177 : vector<1x256xi1> to vector<16x256xi1>
    %179 = vector.broadcast %cst_57 : f32 to vector<16x256xf32>
    %180 = arith.select %178, %176, %179 : vector<16x256xi1>, vector<16x256xf32>
    %c0_58 = arith.constant 0 : index
    %c5_59 = arith.constant 5 : index
    %181 = vector.load %arg5[%c0_58, %c5_59] : memref<16x9xf32, #tpu.memory_space<vmem>>, vector<16x1xf32>
    %182 = vector.broadcast %181 : vector<16x1xf32> to vector<16x256xf32>
    %183 = arith.mulf %180, %182 : vector<16x256xf32>
    %184 = arith.addf %175, %183 : vector<16x256xf32>
    %185 = vector.extract_strided_slice %14 {offsets = [0, 64], sizes = [16, 256], strides = [1, 1]} : vector<16x324xf32> to vector<16x256xf32>
    %cst_60 = arith.constant 0.000000e+00 : f32
    %186 = vector.shape_cast %130 : vector<1x256xi1> to vector<1x256xi1>
    %187 = vector.broadcast %186 : vector<1x256xi1> to vector<16x256xi1>
    %188 = vector.broadcast %cst_60 : f32 to vector<16x256xf32>
    %189 = arith.select %187, %185, %188 : vector<16x256xi1>, vector<16x256xf32>
    %c0_61 = arith.constant 0 : index
    %c6_62 = arith.constant 6 : index
    %190 = vector.load %arg5[%c0_61, %c6_62] : memref<16x9xf32, #tpu.memory_space<vmem>>, vector<16x1xf32>
    %191 = vector.broadcast %190 : vector<16x1xf32> to vector<16x256xf32>
    %192 = arith.mulf %189, %191 : vector<16x256xf32>
    %193 = arith.addf %184, %192 : vector<16x256xf32>
    %194 = vector.extract_strided_slice %14 {offsets = [0, 66], sizes = [16, 256], strides = [1, 1]} : vector<16x324xf32> to vector<16x256xf32>
    %c0_63 = arith.constant 0 : index
    %c7_64 = arith.constant 7 : index
    %195 = vector.load %arg5[%c0_63, %c7_64] : memref<16x9xf32, #tpu.memory_space<vmem>>, vector<16x1xf32>
    %196 = vector.broadcast %195 : vector<16x1xf32> to vector<16x256xf32>
    %197 = arith.mulf %194, %196 : vector<16x256xf32>
    %198 = arith.addf %193, %197 : vector<16x256xf32>
    %199 = vector.extract_strided_slice %14 {offsets = [0, 68], sizes = [16, 256], strides = [1, 1]} : vector<16x324xf32> to vector<16x256xf32>
    %cst_65 = arith.constant 0.000000e+00 : f32
    %200 = vector.shape_cast %153 : vector<1x256xi1> to vector<1x256xi1>
    %201 = vector.broadcast %200 : vector<1x256xi1> to vector<16x256xi1>
    %202 = vector.broadcast %cst_65 : f32 to vector<16x256xf32>
    %203 = arith.select %201, %199, %202 : vector<16x256xi1>, vector<16x256xf32>
    %c0_66 = arith.constant 0 : index
    %c8_67 = arith.constant 8 : index
    %204 = vector.load %arg5[%c0_66, %c8_67] : memref<16x9xf32, #tpu.memory_space<vmem>>, vector<16x1xf32>
    %205 = vector.broadcast %204 : vector<16x1xf32> to vector<16x256xf32>
    %206 = arith.mulf %203, %205 : vector<16x256xf32>
    %207 = arith.addf %198, %206 : vector<16x256xf32>
    %c0_68 = arith.constant 0 : index
    %c0_69 = arith.constant 0 : index
    %208 = vector.load %arg6[%c0_68, %c0_69] : memref<16x2xf32, #tpu.memory_space<vmem>>, vector<16x1xf32>
    %209 = vector.broadcast %208 : vector<16x1xf32> to vector<16x256xf32>
    %210 = arith.addf %119, %209 : vector<16x256xf32>
    %cst_70 = arith.constant 0.000000e+00 : f32
    %211 = vector.broadcast %cst_70 : f32 to vector<16x256xf32>
    %212 = arith.cmpf oge, %210, %211 : vector<16x256xf32>
    %c0_71 = arith.constant 0 : index
    %c1_72 = arith.constant 1 : index
    %213 = vector.load %arg6[%c0_71, %c1_72] : memref<16x2xf32, #tpu.memory_space<vmem>>, vector<16x1xf32>
    %214 = vector.broadcast %213 : vector<16x1xf32> to vector<16x256xf32>
    %215 = arith.mulf %214, %210 : vector<16x256xf32>
    %216 = arith.select %212, %210, %215 : vector<16x256xi1>, vector<16x256xf32>
    %c0_73 = arith.constant 0 : index
    %c0_74 = arith.constant 0 : index
    %217 = vector.load %arg7[%c0_73, %c0_74] : memref<16x2xf32, #tpu.memory_space<vmem>>, vector<16x1xf32>
    %218 = vector.broadcast %217 : vector<16x1xf32> to vector<16x256xf32>
    %219 = arith.addf %207, %218 : vector<16x256xf32>
    %cst_75 = arith.constant 0.000000e+00 : f32
    %220 = vector.broadcast %cst_75 : f32 to vector<16x256xf32>
    %221 = arith.cmpf oge, %219, %220 : vector<16x256xf32>
    %c0_76 = arith.constant 0 : index
    %c1_77 = arith.constant 1 : index
    %222 = vector.load %arg7[%c0_76, %c1_77] : memref<16x2xf32, #tpu.memory_space<vmem>>, vector<16x1xf32>
    %223 = vector.broadcast %222 : vector<16x1xf32> to vector<16x256xf32>
    %224 = arith.mulf %223, %219 : vector<16x256xf32>
    %225 = arith.select %221, %219, %224 : vector<16x256xi1>, vector<16x256xf32>
    %cst_78 = arith.constant dense<0.000000e+00> : vector<16xf32>
    %226 = vector.multi_reduction <add>, %216, %cst_78 [1] : vector<16x256xf32> to vector<16xf32>
    %227 = vector.shape_cast %226 : vector<16xf32> to vector<16x1xf32>
    %cst_79 = arith.constant dense<0.000000e+00> : vector<16xf32>
    %228 = vector.multi_reduction <add>, %225, %cst_79 [1] : vector<16x256xf32> to vector<16xf32>
    %229 = vector.shape_cast %228 : vector<16xf32> to vector<16x1xf32>
    %230 = tpu.concatenate %227, %229 in 0 : vector<16x1xf32>, vector<16x1xf32> -> vector<32x1xf32>
    %cst_80 = arith.constant 3.906250e-03 : f32
    %231 = vector.broadcast %cst_80 : f32 to vector<32x1xf32>
    %232 = arith.mulf %230, %231 : vector<32x1xf32>
    %c0_81 = arith.constant 0 : index
    %c0_82 = arith.constant 0 : index
    %233 = vector.load %arg8[%c0_81, %c0_82] : memref<32x2xf32, #tpu.memory_space<vmem>>, vector<32x2xf32>
    %234 = vector.broadcast %232 : vector<32x1xf32> to vector<32x2xf32>
    %235 = arith.mulf %234, %233 : vector<32x2xf32>
    %cst_83 = arith.constant dense<0.000000e+00> : vector<2xf32>
    %236 = vector.multi_reduction <add>, %235, %cst_83 [0] : vector<32x2xf32> to vector<2xf32>
    %237 = vector.shape_cast %236 : vector<2xf32> to vector<1x2xf32>
    %c0_84 = arith.constant 0 : index
    %c0_85 = arith.constant 0 : index
    %238 = vector.load %arg9[%c0_84, %c0_85] : memref<1x2xf32, #tpu.memory_space<vmem>>, vector<1x2xf32>
    %239 = arith.addf %237, %238 : vector<1x2xf32>
    %cst_86 = arith.constant 0.000000e+00 : f32
    %240 = vector.broadcast %cst_86 : f32 to vector<1x2xf32>
    %241 = arith.maximumf %239, %240 : vector<1x2xf32>
    %c0_87 = arith.constant 0 : index
    %c0_88 = arith.constant 0 : index
    %242 = vector.load %arg10[%c0_87, %c0_88] : memref<32x2xf32, #tpu.memory_space<vmem>>, vector<32x2xf32>
    %243 = vector.broadcast %241 : vector<1x2xf32> to vector<32x2xf32>
    %244 = arith.mulf %242, %243 : vector<32x2xf32>
    %cst_89 = arith.constant dense<0.000000e+00> : vector<32xf32>
    %245 = vector.multi_reduction <add>, %244, %cst_89 [1] : vector<32x2xf32> to vector<32xf32>
    %246 = vector.shape_cast %245 : vector<32xf32> to vector<32x1xf32>
    %c0_90 = arith.constant 0 : index
    %c0_91 = arith.constant 0 : index
    %247 = vector.load %arg11[%c0_90, %c0_91] : memref<32x1xf32, #tpu.memory_space<vmem>>, vector<32x1xf32>
    %248 = arith.addf %246, %247 : vector<32x1xf32>
    %249 = arith.negf %248 : vector<32x1xf32>
    %250 = math.exp %249 : vector<32x1xf32>
    %cst_92 = arith.constant 1.000000e+00 : f32
    %251 = vector.broadcast %cst_92 : f32 to vector<32x1xf32>
    %252 = arith.addf %251, %250 : vector<32x1xf32>
    %253 = arith.divf %251, %252 : vector<32x1xf32>
    %254 = vector.extract_strided_slice %253 {offsets = [0, 0], sizes = [16, 1], strides = [1, 1]} : vector<32x1xf32> to vector<16x1xf32>
    %255 = vector.broadcast %254 : vector<16x1xf32> to vector<16x256xf32>
    %256 = arith.mulf %216, %255 : vector<16x256xf32>
    %257 = vector.extract_strided_slice %253 {offsets = [16, 0], sizes = [16, 1], strides = [1, 1]} : vector<32x1xf32> to vector<16x1xf32>
    %258 = vector.broadcast %257 : vector<16x1xf32> to vector<16x256xf32>
    %259 = arith.mulf %225, %258 : vector<16x256xf32>
    %260 = vector.extract_strided_slice %1 {offsets = [0, 0], sizes = [16, 256], strides = [1, 1]} : vector<32x256xf32> to vector<16x256xf32>
    %261 = arith.addf %256, %260 : vector<16x256xf32>
    %262 = vector.extract_strided_slice %1 {offsets = [16, 0], sizes = [16, 256], strides = [1, 1]} : vector<32x256xf32> to vector<16x256xf32>
    %263 = arith.addf %259, %262 : vector<16x256xf32>
    %c0_93 = arith.constant 0 : index
    %c0_94 = arith.constant 0 : index
    %c0_95 = arith.constant 0 : index
    %264 = vector.load %arg12[%c0_93, %c0_94, %c0_95] : memref<1x32x256xf32, #tpu.memory_space<vmem>>, vector<1x16x256xf32>
    %265 = vector.shape_cast %264 : vector<1x16x256xf32> to vector<16x256xf32>
    %266 = vector.shape_cast %261 : vector<16x256xf32> to vector<1x16x256xf32>
    tpu.vector_store %arg12[%c0_93, %c0_94, %c0_95], %266 {strides = array<i32>} : memref<1x32x256xf32, #tpu.memory_space<vmem>>, vector<1x16x256xf32>,
    %c0_96 = arith.constant 0 : index
    %c16 = arith.constant 16 : index
    %c0_97 = arith.constant 0 : index
    %267 = vector.load %arg12[%c0_96, %c16, %c0_97] : memref<1x32x256xf32, #tpu.memory_space<vmem>>, vector<1x16x256xf32>
    %268 = vector.shape_cast %267 : vector<1x16x256xf32> to vector<16x256xf32>
    %269 = vector.shape_cast %263 : vector<16x256xf32> to vector<1x16x256xf32>
    tpu.vector_store %arg12[%c0_96, %c16, %c0_97], %269 {strides = array<i32>} : memref<1x32x256xf32, #tpu.memory_space<vmem>>, vector<1x16x256xf32>,
    return
  }
  func.func @transform_0(%arg0: i32) -> (i32, i32, i32) {
    %c0_i32 = arith.constant 0 : i32
    %c0_i32_0 = arith.constant 0 : i32
    %c0_i32_1 = arith.constant 0 : i32
    return %arg0, %c0_i32, %c0_i32_0 : i32, i32, i32
  }
  func.func @transform_1(%arg0: i32) -> (i32, i32) {
    %c0_i32 = arith.constant 0 : i32
    %c0_i32_0 = arith.constant 0 : i32
    %c0_i32_1 = arith.constant 0 : i32
    return %c0_i32, %c0_i32_0 : i32, i32
  }
  func.func @transform_2(%arg0: i32) -> (i32, i32) {
    %c0_i32 = arith.constant 0 : i32
    %c0_i32_0 = arith.constant 0 : i32
    %c0_i32_1 = arith.constant 0 : i32
    return %c0_i32, %c0_i32_0 : i32, i32
  }
  func.func @transform_3(%arg0: i32) -> (i32, i32) {
    %c0_i32 = arith.constant 0 : i32
    %c0_i32_0 = arith.constant 0 : i32
    %c0_i32_1 = arith.constant 0 : i32
    return %c0_i32, %c0_i32_0 : i32, i32
  }
  func.func @transform_4(%arg0: i32) -> (i32, i32) {
    %c0_i32 = arith.constant 0 : i32
    %c0_i32_0 = arith.constant 0 : i32
    %c0_i32_1 = arith.constant 0 : i32
    return %c0_i32, %c0_i32_0 : i32, i32
  }
  func.func @transform_5(%arg0: i32) -> (i32, i32) {
    %c0_i32 = arith.constant 0 : i32
    %c0_i32_0 = arith.constant 0 : i32
    %c0_i32_1 = arith.constant 0 : i32
    return %c0_i32, %c0_i32_0 : i32, i32
  }
  func.func @transform_6(%arg0: i32) -> (i32, i32) {
    %c0_i32 = arith.constant 0 : i32
    %c0_i32_0 = arith.constant 0 : i32
    %c0_i32_1 = arith.constant 0 : i32
    return %c0_i32, %c0_i32_0 : i32, i32
  }
  func.func @transform_7(%arg0: i32) -> (i32, i32) {
    %c0_i32 = arith.constant 0 : i32
    %c0_i32_0 = arith.constant 0 : i32
    %c0_i32_1 = arith.constant 0 : i32
    return %c0_i32, %c0_i32_0 : i32, i32
  }
  func.func @transform_8(%arg0: i32) -> (i32, i32) {
    %c0_i32 = arith.constant 0 : i32
    %c0_i32_0 = arith.constant 0 : i32
    %c0_i32_1 = arith.constant 0 : i32
    return %c0_i32, %c0_i32_0 : i32, i32
  }
  func.func @transform_9(%arg0: i32) -> (i32, i32) {
    %c0_i32 = arith.constant 0 : i32
    %c0_i32_0 = arith.constant 0 : i32
    %c0_i32_1 = arith.constant 0 : i32
    return %c0_i32, %c0_i32_0 : i32, i32
  }
  func.func @transform_10(%arg0: i32) -> (i32, i32) {
    %c0_i32 = arith.constant 0 : i32
    %c0_i32_0 = arith.constant 0 : i32
    %c0_i32_1 = arith.constant 0 : i32
    return %c0_i32, %c0_i32_0 : i32, i32
  }
  func.func @transform_11(%arg0: i32) -> (i32, i32, i32) {
    %c0_i32 = arith.constant 0 : i32
    %c0_i32_0 = arith.constant 0 : i32
    %c0_i32_1 = arith.constant 0 : i32
    return %arg0, %c0_i32, %c0_i32_0 : i32, i32, i32
  }
}

</mosaic_0001>

<llo_original>
// kernel: squeeze.2
$region0: #{squeeze.2}
  %s0 = inlined_call_operand.vmem [shape: f32[16,3,3], index: 0, kind: input, shape index: {}]
  %s1 = inlined_call_operand.vmem [shape: f32[16,9], index: 1, kind: output, shape index: {}]
  $region1: #{squeeze.2} parent=0
    #allocation0 [shape = 'u8[12288]{0}', space=vmem, size = 0x3000, scoped, tag = 'scoped mem for input reshape']
    %s3 = ssub.s32 16, 1
    %s4 = scalar_lea.vmem %s0, 8
    %v5 = vld [vmem:[%s4] sm:%s3]
    %s6 = scalar_lea.vmem [#allocation0], 16
    %7 = vst [vmem:[%s6] sm:%s3] %v5
    %s8 = scalar_lea.vmem %s0, 4
    %v9 = vld [vmem:[%s8] sm:%s3]
    %s10 = scalar_lea.vmem [#allocation0], 8
    %11 = vst [vmem:[%s10] sm:%s3] %v9
    %v12 = vld [vmem:[%s0] sm:%s3]
    %13 = vst [vmem:[#allocation0] sm:%s3] %v12
    %v14 = vld [vmem:[#allocation0] sm:$0x7]
    %vm15 = vcmask 130048
    %16 = vst.msk [vmem:[%s1] sm:$0x7] %vm15, %v14
    %s17 = scalar_lea.vmem [#allocation0], 8
    %v18 = vld [vmem:[%s17] sm:$0x7]
    %vm19 = vcmask 130048
    %s20 = scalar_lea.vmem %s1, 3
    %21 = vst.msk [vmem:[%s20] sm:$0x7] %vm19, %v18
    %s22 = scalar_lea.vmem [#allocation0], 16
    %v23 = vld [vmem:[%s22] sm:$0x7]
    %vm24 = vcmask 130048
    %s25 = scalar_lea.vmem %s1, 6
    %26 = vst.msk [vmem:[%s25] sm:$0x7] %vm24, %v23

// kernel: context_guided_forward.1
$region0: #{context_guided_forward.1}
  #allocation0 [shape = 'u32[]', space=smem, size = 0x4, offset = 0x4, fixed_abs, tag = 'smem constant byte address 0x4 - core index']
  #allocation1 [shape = 'u32[72,128]{1,0:T(1,128)}', space=vmem, size = 0x9000, scoped, tag = 'internal scratch']
  %s0 = inlined_call_operand.vmem [shape: f32[2,32,256], index: 0, kind: input, shape index: {}, may-alias: {0,11}]
  %s1 = inlined_call_operand.vmem [shape: f32[16,32], index: 1, kind: input, shape index: {}]
  %s2 = inlined_call_operand.vmem [shape: f32[16,2], index: 2, kind: input, shape index: {}]
  %s3 = inlined_call_operand.vmem [shape: f32[16,9], index: 3, kind: input, shape index: {}]
  %s4 = inlined_call_operand.vmem [shape: f32[16,9], index: 4, kind: input, shape index: {}]
  %s5 = inlined_call_operand.vmem [shape: f32[16,2], index: 5, kind: input, shape index: {}]
  %s6 = inlined_call_operand.vmem [shape: f32[16,2], index: 6, kind: input, shape index: {}]
  %s7 = inlined_call_operand.vmem [shape: f32[32,2], index: 7, kind: input, shape index: {}]
  %s8 = inlined_call_operand.vmem [shape: f32[1,2], index: 8, kind: input, shape index: {}]
  %s9 = inlined_call_operand.vmem [shape: f32[32,2], index: 9, kind: input, shape index: {}]
  %s10 = inlined_call_operand.vmem [shape: f32[32,1], index: 10, kind: input, shape index: {}]
  %s11 = inlined_call_operand.vmem [shape: f32[2,32,256], index: 11, kind: output, shape index: {}, may-alias: {0,11}]
  %s12 = sld [smem:[#allocation0]]
  $region77: #{context_guided_forward.1} parent=0
    _
  %s14 = ssub.s32 1, %s12
  %s15 = scalar_select 0, %s14, %s12
  loop: start=0, step=1, limit=4
  $region2: #{context_guided_forward.1} parent=0 // loop_pre_header
    _
  $region3: #{context_guided_forward.1} parent=0 // loop_header
    %s17 = sphi 0, %s21
    %p18 = scmp.ge.s32.totalorder %s17, 4
    %s27 = sphi 0, %s29
    %s30 = sphi 0, %s27
    %s31 = sphi 0, %s30
    %s47 = sphi 0, %s31
    %s51 = sphi 0, %s51
    %s53 = sphi 0, %s51
    %s54 = sphi 0, %s53
    %s68 = sphi 0, %s54
    %s72 = sphi 0, %s72
    %s74 = sphi 0, %s72
    %s75 = sphi 0, %s74
    %s89 = sphi 0, %s75
    %s93 = sphi 0, %s93
    %s95 = sphi 0, %s93
    %s96 = sphi 0, %s95
    %s110 = sphi 0, %s96
    %s114 = sphi 0, %s114
    %s116 = sphi 0, %s114
    %s117 = sphi 0, %s116
    %s131 = sphi 0, %s117
    %s135 = sphi 0, %s135
    %s137 = sphi 0, %s135
    %s138 = sphi 0, %s137
    %s152 = sphi 0, %s138
    %s156 = sphi 0, %s156
    %s158 = sphi 0, %s156
    %s159 = sphi 0, %s158
    %s173 = sphi 0, %s159
    %s177 = sphi 0, %s177
    %s179 = sphi 0, %s177
    %s180 = sphi 0, %s179
    %s194 = sphi 0, %s180
    %s198 = sphi 0, %s198
    %s200 = sphi 0, %s198
    %s201 = sphi 0, %s200
    %s215 = sphi 0, %s201
    %s219 = sphi 0, %s219
    %s221 = sphi 0, %s219
    %s222 = sphi 0, %s221
    %s236 = sphi 0, %s222
    %s240 = sphi 0, %s240
    %s242 = sphi 0, %s240
    %s243 = sphi 0, %s242
    %s257 = sphi 0, %s243
    %s263 = sphi 0, %s265
    %s266 = sphi 0, %s263
    %s267 = sphi 0, %s266
    %s283 = sphi 0, %s267
  $region4: #{context_guided_forward.1} parent=0 // loop_header_branch
    %20 = sbr.rel (%p18) target = $region8
  $region5: #{context_guided_forward.1} parent=0 // loop_body
    %s22 = ssub.s32 %s17, 1
    %s23 = ssub.s32 %s17, 2
    %s24 = sadd.s32 %s17, 1
    %s25 = ssub.s32 %s17, %s24
    %p26 = scmp.eq.s32.totalorder %s25, 0
    %s28 = sadd.s32 %s27, 1
    %s29 = scalar_select %p26, %s27, %s28
    %p32 = pneg %p26
    %p33 = scmp.eq.s32.totalorder %s17, 1
    %p34 = por %p32, %p33
    %p35 = scmp.ne.s32.totalorder %s27, %s30
    %p36 = scmp.eq.s32.totalorder %s17, 0
    %p37 = por %p35, %p36
    %p38 = scmp.ne.s32.totalorder %s27, %s30
    %p39 = scmp.eq.s32.totalorder %s22, 1
    %p40 = por %p38, %p39
    %p41 = scmp.ne.s32.totalorder %s30, %s31
    %p42 = scmp.eq.s32.totalorder %s22, 0
    %p43 = por %p41, %p42
    %p44 = scmp.ne.s32.totalorder %s30, %s31
    %p45 = scmp.eq.s32.totalorder %s23, 1
    %p46 = por %p44, %p45
    %p48 = scmp.ne.s32.totalorder %s31, %s47
    %p49 = scmp.eq.s32.totalorder %s23, 0
    %p50 = por %p48, %p49
    %s52 = sadd.s32 %s51, 1
    %p55 = scmp.eq.s32.totalorder %s17, 1
    %p56 = scmp.ne.s32.totalorder %s51, %s53
    %p57 = scmp.eq.s32.totalorder %s17, 0
    %p58 = por %p56, %p57
    %p59 = scmp.ne.s32.totalorder %s51, %s53
    %p60 = scmp.eq.s32.totalorder %s22, 1
    %p61 = por %p59, %p60
    %p62 = scmp.ne.s32.totalorder %s53, %s54
    %p63 = scmp.eq.s32.totalorder %s22, 0
    %p64 = por %p62, %p63
    %p65 = scmp.ne.s32.totalorder %s53, %s54
    %p66 = scmp.eq.s32.totalorder %s23, 1
    %p67 = por %p65, %p66
    %p69 = scmp.ne.s32.totalorder %s54, %s68
    %p70 = scmp.eq.s32.totalorder %s23, 0
    %p71 = por %p69, %p70
    %s73 = sadd.s32 %s72, 1
    %p76 = scmp.eq.s32.totalorder %s17, 1
    %p77 = scmp.ne.s32.totalorder %s72, %s74
    %p78 = scmp.eq.s32.totalorder %s17, 0
    %p79 = por %p77, %p78
    %p80 = scmp.ne.s32.totalorder %s72, %s74
    %p81 = scmp.eq.s32.totalorder %s22, 1
    %p82 = por %p80, %p81
    %p83 = scmp.ne.s32.totalorder %s74, %s75
    %p84 = scmp.eq.s32.totalorder %s22, 0
    %p85 = por %p83, %p84
    %p86 = scmp.ne.s32.totalorder %s74, %s75
    %p87 = scmp.eq.s32.totalorder %s23, 1
    %p88 = por %p86, %p87
    %p90 = scmp.ne.s32.totalorder %s75, %s89
    %p91 = scmp.eq.s32.totalorder %s23, 0
    %p92 = por %p90, %p91
    %s94 = sadd.s32 %s93, 1
    %p97 = scmp.eq.s32.totalorder %s17, 1
    %p98 = scmp.ne.s32.totalorder %s93, %s95
    %p99 = scmp.eq.s32.totalorder %s17, 0
    %p100 = por %p98, %p99
    %p101 = scmp.ne.s32.totalorder %s93, %s95
    %p102 = scmp.eq.s32.totalorder %s22, 1
    %p103 = por %p101, %p102
    %p104 = scmp.ne.s32.totalorder %s95, %s96
    %p105 = scmp.eq.s32.totalorder %s22, 0
    %p106 = por %p104, %p105
    %p107 = scmp.ne.s32.totalorder %s95, %s96
    %p108 = scmp.eq.s32.totalorder %s23, 1
    %p109 = por %p107, %p108
    %p111 = scmp.ne.s32.totalorder %s96, %s110
    %p112 = scmp.eq.s32.totalorder %s23, 0
    %p113 = por %p111, %p112
    %s115 = sadd.s32 %s114, 1
    %p118 = scmp.eq.s32.totalorder %s17, 1
    %p119 = scmp.ne.s32.totalorder %s114, %s116
    %p120 = scmp.eq.s32.totalorder %s17, 0
    %p121 = por %p119, %p120
    %p122 = scmp.ne.s32.totalorder %s114, %s116
    %p123 = scmp.eq.s32.totalorder %s22, 1
    %p124 = por %p122, %p123
    %p125 = scmp.ne.s32.totalorder %s116, %s117
    %p126 = scmp.eq.s32.totalorder %s22, 0
    %p127 = por %p125, %p126
    %p128 = scmp.ne.s32.totalorder %s116, %s117
    %p129 = scmp.eq.s32.totalorder %s23, 1
    %p130 = por %p128, %p129
    %p132 = scmp.ne.s32.totalorder %s117, %s131
    %p133 = scmp.eq.s32.totalorder %s23, 0
    %p134 = por %p132, %p133
    %s136 = sadd.s32 %s135, 1
    %p139 = scmp.eq.s32.totalorder %s17, 1
    %p140 = scmp.ne.s32.totalorder %s135, %s137
    %p141 = scmp.eq.s32.totalorder %s17, 0
    %p142 = por %p140, %p141
    %p143 = scmp.ne.s32.totalorder %s135, %s137
    %p144 = scmp.eq.s32.totalorder %s22, 1
    %p145 = por %p143, %p144
    %p146 = scmp.ne.s32.totalorder %s137, %s138
    %p147 = scmp.eq.s32.totalorder %s22, 0
    %p148 = por %p146, %p147
    %p149 = scmp.ne.s32.totalorder %s137, %s138
    %p150 = scmp.eq.s32.totalorder %s23, 1
    %p151 = por %p149, %p150
    %p153 = scmp.ne.s32.totalorder %s138, %s152
    %p154 = scmp.eq.s32.totalorder %s23, 0
    %p155 = por %p153, %p154
    %s157 = sadd.s32 %s156, 1
    %p160 = scmp.eq.s32.totalorder %s17, 1
    %p161 = scmp.ne.s32.totalorder %s156, %s158
    %p162 = scmp.eq.s32.totalorder %s17, 0
    %p163 = por %p161, %p162
    %p164 = scmp.ne.s32.totalorder %s156, %s158
    %p165 = scmp.eq.s32.totalorder %s22, 1
    %p166 = por %p164, %p165
    %p167 = scmp.ne.s32.totalorder %s158, %s159
    %p168 = scmp.eq.s32.totalorder %s22, 0
    %p169 = por %p167, %p168
    %p170 = scmp.ne.s32.totalorder %s158, %s159
    %p171 = scmp.eq.s32.totalorder %s23, 1
    %p172 = por %p170, %p171
    %p174 = scmp.ne.s32.totalorder %s159, %s173
    %p175 = scmp.eq.s32.totalorder %s23, 0
    %p176 = por %p174, %p175
    %s178 = sadd.s32 %s177, 1
    %p181 = scmp.eq.s32.totalorder %s17, 1
    %p182 = scmp.ne.s32.totalorder %s177, %s179
    %p183 = scmp.eq.s32.totalorder %s17, 0
    %p184 = por %p182, %p183
    %p185 = scmp.ne.s32.totalorder %s177, %s179
    %p186 = scmp.eq.s32.totalorder %s22, 1
    %p187 = por %p185, %p186
    %p188 = scmp.ne.s32.totalorder %s179, %s180
    %p189 = scmp.eq.s32.totalorder %s22, 0
    %p190 = por %p188, %p189
    %p191 = scmp.ne.s32.totalorder %s179, %s180
    %p192 = scmp.eq.s32.totalorder %s23, 1
    %p193 = por %p191, %p192
    %p195 = scmp.ne.s32.totalorder %s180, %s194
    %p196 = scmp.eq.s32.totalorder %s23, 0
    %p197 = por %p195, %p196
    %s199 = sadd.s32 %s198, 1
    %p202 = scmp.eq.s32.totalorder %s17, 1
    %p203 = scmp.ne.s32.totalorder %s198, %s200
    %p204 = scmp.eq.s32.totalorder %s17, 0
    %p205 = por %p203, %p204
    %p206 = scmp.ne.s32.totalorder %s198, %s200
    %p207 = scmp.eq.s32.totalorder %s22, 1
    %p208 = por %p206, %p207
    %p209 = scmp.ne.s32.totalorder %s200, %s201
    %p210 = scmp.eq.s32.totalorder %s22, 0
    %p211 = por %p209, %p210
    %p212 = scmp.ne.s32.totalorder %s200, %s201
    %p213 = scmp.eq.s32.totalorder %s23, 1
    %p214 = por %p212, %p213
    %p216 = scmp.ne.s32.totalorder %s201, %s215
    %p217 = scmp.eq.s32.totalorder %s23, 0
    %p218 = por %p216, %p217
    %s220 = sadd.s32 %s219, 1
    %p223 = scmp.eq.s32.totalorder %s17, 1
    %p224 = scmp.ne.s32.totalorder %s219, %s221
    %p225 = scmp.eq.s32.totalorder %s17, 0
    %p226 = por %p224, %p225
    %p227 = scmp.ne.s32.totalorder %s219, %s221
    %p228 = scmp.eq.s32.totalorder %s22, 1
    %p229 = por %p227, %p228
    %p230 = scmp.ne.s32.totalorder %s221, %s222
    %p231 = scmp.eq.s32.totalorder %s22, 0
    %p232 = por %p230, %p231
    %p233 = scmp.ne.s32.totalorder %s221, %s222
    %p234 = scmp.eq.s32.totalorder %s23, 1
    %p235 = por %p233, %p234
    %p237 = scmp.ne.s32.totalorder %s222, %s236
    %p238 = scmp.eq.s32.totalorder %s23, 0
    %p239 = por %p237, %p238
    %s241 = sadd.s32 %s240, 1
    %p244 = scmp.eq.s32.totalorder %s17, 1
    %p245 = scmp.ne.s32.totalorder %s240, %s242
    %p246 = scmp.eq.s32.totalorder %s17, 0
    %p247 = por %p245, %p246
    %p248 = scmp.ne.s32.totalorder %s240, %s242
    %p249 = scmp.eq.s32.totalorder %s22, 1
    %p250 = por %p248, %p249
    %p251 = scmp.ne.s32.totalorder %s242, %s243
    %p252 = scmp.eq.s32.totalorder %s22, 0
    %p253 = por %p251, %p252
    %p254 = scmp.ne.s32.totalorder %s242, %s243
    %p255 = scmp.eq.s32.totalorder %s23, 1
    %p256 = por %p254, %p255
    %p258 = scmp.ne.s32.totalorder %s243, %s257
    %p259 = scmp.eq.s32.totalorder %s23, 0
    %p260 = por %p258, %p259
    %s261 = ssub.s32 %s17, %s24
    %p262 = scmp.eq.s32.totalorder %s261, 0
    %s264 = sadd.s32 %s263, 1
    %s265 = scalar_select %p262, %s263, %s264
    %p268 = pneg %p262
    %p269 = scmp.eq.s32.totalorder %s17, 1
    %p270 = por %p268, %p269
    %p271 = scmp.ne.s32.totalorder %s263, %s266
    %p272 = scmp.eq.s32.totalorder %s17, 0
    %p273 = por %p271, %p272
    %p274 = scmp.ne.s32.totalorder %s263, %s266
    %p275 = scmp.eq.s32.totalorder %s22, 1
    %p276 = por %p274, %p275
    %p277 = scmp.ne.s32.totalorder %s266, %s267
    %p278 = scmp.eq.s32.totalorder %s22, 0
    %p279 = por %p277, %p278
    %p280 = scmp.ne.s32.totalorder %s266, %s267
    %p281 = scmp.eq.s32.totalorder %s23, 1
    %p282 = por %p280, %p281
    %p284 = scmp.ne.s32.totalorder %s267, %s283
    %p285 = scmp.eq.s32.totalorder %s23, 0
    %p286 = por %p284, %p285
    %p287 = scmp.le.s32.totalorder 1, %s17
    %p288 = scmp.lt.s32.totalorder %s17, 3
    %p289 = pnand %p287, %p288
    %p290 = pneg %p289
    // Predicated region
    $region9: #{context_guided_forward.1} parent=5 // pred_check
      _
    $region10: #{context_guided_forward.1} parent=5 // pred_check_branch
      %292 = sbr.rel (%p289) target = $region12
    $region11: #{context_guided_forward.1} parent=5 // pred_region
      %s293 = ssub.s32 %s17, 1
      // Predicated region
      $region13: #{context_guided_forward.1} parent=11 // pred_check
        %p294 = pneg %p64
      $region14: #{context_guided_forward.1} parent=11 // pred_check_branch
        %296 = sbr.rel (%p294) target = $region16
      $region15: #{context_guided_forward.1} parent=11 // pred_region
        _
      $region16: #{context_guided_forward.1} parent=11 // pred_fallthru
        _
      // Predicated region
      $region17: #{context_guided_forward.1} parent=11 // pred_check
        %p297 = pneg %p85
      $region18: #{context_guided_forward.1} parent=11 // pred_check_branch
        %299 = sbr.rel (%p297) target = $region20
      $region19: #{context_guided_forward.1} parent=11 // pred_region
        _
      $region20: #{context_guided_forward.1} parent=11 // pred_fallthru
        _
      // Predicated region
      $region21: #{context_guided_forward.1} parent=11 // pred_check
        %p300 = pneg %p106
      $region22: #{context_guided_forward.1} parent=11 // pred_check_branch
        %302 = sbr.rel (%p300) target = $region24
      $region23: #{context_guided_forward.1} parent=11 // pred_region
        _
      $region24: #{context_guided_forward.1} parent=11 // pred_fallthru
        _
      // Predicated region
      $region25: #{context_guided_forward.1} parent=11 // pred_check
        %p303 = pneg %p127
      $region26: #{context_guided_forward.1} parent=11 // pred_check_branch
        %305 = sbr.rel (%p303) target = $region28
      $region27: #{context_guided_forward.1} parent=11 // pred_region
        _
      $region28: #{context_guided_forward.1} parent=11 // pred_fallthru
        _
      // Predicated region
      $region29: #{context_guided_forward.1} parent=11 // pred_check
        %p306 = pneg %p148
      $region30: #{context_guided_forward.1} parent=11 // pred_check_branch
        %308 = sbr.rel (%p306) target = $region32
      $region31: #{context_guided_forward.1} parent=11 // pred_region
        _
      $region32: #{context_guided_forward.1} parent=11 // pred_fallthru
        _
      // Predicated region
      $region33: #{context_guided_forward.1} parent=11 // pred_check
        %p309 = pneg %p169
      $region34: #{context_guided_forward.1} parent=11 // pred_check_branch
        %311 = sbr.rel (%p309) target = $region36
      $region35: #{context_guided_forward.1} parent=11 // pred_region
        _
      $region36: #{context_guided_forward.1} parent=11 // pred_fallthru
        _
      // Predicated region
      $region37: #{context_guided_forward.1} parent=11 // pred_check
        %p312 = pneg %p190
      $region38: #{context_guided_forward.1} parent=11 // pred_check_branch
        %314 = sbr.rel (%p312) target = $region40
      $region39: #{context_guided_forward.1} parent=11 // pred_region
        _
      $region40: #{context_guided_forward.1} parent=11 // pred_fallthru
        _
      // Predicated region
      $region41: #{context_guided_forward.1} parent=11 // pred_check
        %p315 = pneg %p211
      $region42: #{context_guided_forward.1} parent=11 // pred_check_branch
        %317 = sbr.rel (%p315) target = $region44
      $region43: #{context_guided_forward.1} parent=11 // pred_region
        _
      $region44: #{context_guided_forward.1} parent=11 // pred_fallthru
        _
      // Predicated region
      $region45: #{context_guided_forward.1} parent=11 // pred_check
        %p318 = pneg %p232
      $region46: #{context_guided_forward.1} parent=11 // pred_check_branch
        %320 = sbr.rel (%p318) target = $region48
      $region47: #{context_guided_forward.1} parent=11 // pred_region
        _
      $region48: #{context_guided_forward.1} parent=11 // pred_fallthru
        _
      // Predicated region
      $region49: #{context_guided_forward.1} parent=11 // pred_check
        %p321 = pneg %p253
      $region50: #{context_guided_forward.1} parent=11 // pred_check_branch
        %323 = sbr.rel (%p321) target = $region52
      $region51: #{context_guided_forward.1} parent=11 // pred_region
        _
      $region52: #{context_guided_forward.1} parent=11 // pred_fallthru
        _
    $region12: #{context_guided_forward.1} parent=5 // pred_fallthru
      _
    %p324 = scmp.lt.s32.totalorder %s17, 2
    // Predicated region
    $region53: #{context_guided_forward.1} parent=5 // pred_check
      %p325 = pneg %p324
    $region54: #{context_guided_forward.1} parent=5 // pred_check_branch
      %327 = sbr.rel (%p325) target = $region56
    $region55: #{context_guided_forward.1} parent=5 // pred_region
      // Predicated region
      $region57: #{context_guided_forward.1} parent=55 // pred_check
        %p328 = pneg %p37
      $region58: #{context_guided_forward.1} parent=55 // pred_check_branch
        %330 = sbr.rel (%p328) target = $region60
      $region59: #{context_guided_forward.1} parent=55 // pred_region
        %p331 = scmp.lt.s32.totalorder %s17, 1
        %s332 = scalar_select %p331, %s17, 1
        %s333 = smul.addr %s332, 8
        %s334 = smul.addr %s333, 8
        %s335 = scalar_lea.vmem %s0, %s334
      $region60: #{context_guided_forward.1} parent=55 // pred_fallthru
        _
    $region56: #{context_guided_forward.1} parent=5 // pred_fallthru
      _
    %p336 = scmp.le.s32.totalorder 1, %s17
    %p337 = scmp.lt.s32.totalorder %s17, 3
    %p338 = pnand %p336, %p337
    %p339 = pneg %p338
    // Predicated region
    $region61: #{context_guided_forward.1} parent=5 // pred_check
      _
    $region62: #{context_guided_forward.1} parent=5 // pred_check_branch
      %341 = sbr.rel (%p338) target = $region64
    $region63: #{context_guided_forward.1} parent=5 // pred_region
      %s342 = ssub.s32 %s17, 1
      %p343 = scmp.lt.s32.totalorder %s22, 1
      %s344 = scalar_select %p343, %s22, 1
      %s345 = smul.addr %s344, 8
      %s346 = smul.addr %s345, 8
      %s347 = scalar_lea.vmem %s0, %s346
      %p348 = pneg %p43
      %p349 = pneg %p40
      %p350 = pneg %p64
      %p351 = pneg %p61
      %p352 = pneg %p85
      %p353 = pneg %p82
      %p354 = pneg %p106
      %p355 = pneg %p103
      %p356 = pneg %p127
      %p357 = pneg %p124
      %p358 = pneg %p148
      %p359 = pneg %p145
      %p360 = pneg %p169
      %p361 = pneg %p166
      %p362 = pneg %p190
      %p363 = pneg %p187
      %p364 = pneg %p211
      %p365 = pneg %p208
      %p366 = pneg %p232
      %p367 = pneg %p229
      %p368 = pneg %p253
      %p369 = pneg %p250
      %p370 = pneg %p279
      %p371 = pneg %p276
      %p372 = scmp.lt.s32.totalorder %s22, 1
      %s373 = scalar_select %p372, %s22, 1
      %s374 = smul.addr %s373, 8
      %s375 = smul.addr %s374, 8
      %s376 = scalar_lea.vmem %s11, %s375
      %p377 = scmp.lt.s32.totalorder %s22, 1
      %s378 = scalar_select %p377, %s22, 1
      %s379 = smul.addr %s378, 8
      %s380 = smul.addr %s379, 8
      %s381 = scalar_lea.vmem %s0, %s380
      %p382 = scmp.lt.s32.totalorder %s22, 1
      %s383 = scalar_select %p382, %s22, 1
      %s384 = smul.addr %s383, 8
      %s385 = smul.addr %s384, 8
      %s386 = scalar_lea.vmem %s11, %s385
      %v387 = vld [vmem:[%s381] sm:$0xff]
      %v388 = vld [vmem:[%s381 + $0x8] sm:$0xff]
      %v389 = vld [vmem:[%s381 + $0x10] sm:$0xff]
      %v390 = vld [vmem:[%s381 + $0x18] sm:$0xff]
      %v391 = vld [vmem:[%s381 + $0x20] sm:$0xff]
      %v392 = vld [vmem:[%s381 + $0x28] sm:$0xff]
      %v393 = vld [vmem:[%s381 + $0x30] sm:$0xff]
      %v394 = vld [vmem:[%s381 + $0x38] sm:$0xff]
      %v395 = vld [vmem:[%s1] sm:$0xff]
      %v396 = vld [vmem:[%s1 + $0x8] sm:$0xff]
      %v397 = vld [vmem:[%s2] sm:$0xff]
      %v398 = vld [vmem:[%s2 + $0x8] sm:$0xff]
      %400 = vset.pattern.permute.xlu0 0
      %401 = vperm.xlu0 %400, %v397
      %v402 = vpop.permute.xlu0 %401
      %405 = vset.pattern.permute.xlu0 0
      %406 = vperm.xlu0 %405, %v398
      %v407 = vpop.permute.xlu0 %406
      %vm409 = vcmask 261120
      %v411 = vsel %vm409, %v395, 0
      %v414 = vsel %vm409, %v396, 0
      %416 = vmatpush.msra.mxu0 0.0
      %417 = vmatpush.msra.mxu0 0.0
      %418 = vmatpush.msra.mxu0 0.0
      %419 = vmatpush.msra.mxu0 0.0
      %420 = vmatpush.msra.mxu0 0.0
      %421 = vmatpush.msra.mxu0 0.0
      %422 = vmatpush.msra.mxu0 0.0
      %423 = vmatpush.msra.mxu0 0.0
      %424 = vmatpush.msra.mxu0 0.0
      %425 = vmatpush.msra.mxu0 0.0
      %426 = vmatpush.msra.mxu0 0.0
      %427 = vmatpush.msra.mxu0 0.0
      %428 = vmatpush.msra.mxu0 %v393
      %429 = vmatpush.msra.mxu0 %v391
      %430 = vmatpush.msra.mxu0 %v389
      %431 = vmatpush.msra.mxu0 %v387
      %432 = vmatmul.f32.gmra.mxu0 %v411
      %v433 = vpop.f32.mrf.mxu0
      %v434 = vadd.f32 %v402, %v433
      %435 = vmatmul.f32.gmra.mxu0 %v414
      %v436 = vpop.f32.mrf.mxu0
      %v437 = vadd.f32 %v407, %v436
      %438 = vdwg.mxu0
      %439 = vmatpush.msra.mxu0 0.0
      %440 = vmatpush.msra.mxu0 0.0
      %441 = vmatpush.msra.mxu0 0.0
      %442 = vmatpush.msra.mxu0 0.0
      %443 = vmatpush.msra.mxu0 0.0
      %444 = vmatpush.msra.mxu0 0.0
      %445 = vmatpush.msra.mxu0 0.0
      %446 = vmatpush.msra.mxu0 0.0
      %447 = vmatpush.msra.mxu0 0.0
      %448 = vmatpush.msra.mxu0 0.0
      %449 = vmatpush.msra.mxu0 0.0
      %450 = vmatpush.msra.mxu0 0.0
      %451 = vmatpush.msra.mxu0 %v394
      %452 = vmatpush.msra.mxu0 %v392
      %453 = vmatpush.msra.mxu0 %v390
      %454 = vmatpush.msra.mxu0 %v388
      %455 = vmatmul.f32.gmra.mxu0 %v411
      %v456 = vpop.f32.mrf.mxu0
      %v457 = vadd.f32 %v402, %v456
      %458 = vmatmul.f32.gmra.mxu0 %v414
      %v459 = vpop.f32.mrf.mxu0
      %v460 = vadd.f32 %v407, %v459
      %461 = vdwg.mxu0
      %vm462 = vcmp.ge.f32.partialorder %v434, 0.0
      %vm463 = vcmp.ge.f32.partialorder %v457, 0.0
      %vm464 = vcmp.ge.f32.partialorder %v437, 0.0
      %vm465 = vcmp.ge.f32.partialorder %v460, 0.0
      %466 = vset.pattern.permute.xlu0 1
      %467 = vperm.xlu0 %466, %v397
      %v468 = vpop.permute.xlu0 %467
      %470 = vset.pattern.permute.xlu0 1
      %471 = vperm.xlu0 %470, %v398
      %v472 = vpop.permute.xlu0 %471
      %v474 = vmul.f32 %v468, %v434
      %v475 = vmul.f32 %v468, %v457
      %v476 = vmul.f32 %v472, %v437
      %v477 = vmul.f32 %v472, %v460
      %v478 = vsel %vm462, %v434, %v474
      %v479 = vsel %vm463, %v457, %v475
      %v480 = vsel %vm464, %v437, %v476
      %v481 = vsel %vm465, %v460, %v477
      %486 = vrot.lane.b32.xlu0 %v478, 34
      %v487 = vpop.permute.xlu0 %486
      %488 = vrot.lane.b32.xlu0 %v479, 34
      %v489 = vpop.permute.xlu0 %488
      %490 = vrot.lane.b32.xlu0 %v480, 34
      %v491 = vpop.permute.xlu0 %490
      %492 = vrot.lane.b32.xlu0 %v481, 34
      %v493 = vpop.permute.xlu0 %492
      %vm494 = vcmask 277504
      %v495 = vsel %vm494, %v487, %v489
      %v496 = vsel %vm494, %v491, %v493
      %v503 = vsel %vm494, 0.0, %v487
      %v504 = vsel %vm494, 0.0, %v491
      %v505 = vsel %vm494, %v489, 0.0
      %v506 = vsel %vm494, %v493, 0.0
      %v507 = vlaneseq
      %v508 = vand.u32 %v507, 127
      %v509 = vadd.s32 %v508, 128
      %vm510 = vcmp.lt.s32.totalorder %v508, 0
      %v511 = vsub.s32 0, %v508
      %v512 = vsel %vm510, %v511, %v508
      %v513 = vshrl.u32 %v512, 4
      %v514 = vand.u32 %v512, 15
      %v515 = vsub.s32 0, %v514
      %v516 = vsel %vm510, %v515, %v514
      %vm517 = vcmp.lt.s32.totalorder %v509, 0
      %v518 = vsub.s32 0, %v509
      %v519 = vsel %vm517, %v518, %v509
      %v520 = vshrl.u32 %v519, 4
      %v521 = vand.u32 %v519, 15
      %v522 = vsub.s32 0, %v521
      %v523 = vsel %vm517, %v522, %v521
      %vm524 = vcmp.ne.s32.totalorder %v516, 0
      %vm525 = vcmp.ne.s32.totalorder %v523, 0
      %vm526 = vcmp.lt.s32.totalorder %v516, 0
      %vm527 = vcmp.lt.s32.totalorder %v523, 0
      %vm528 = vmand %vm526, %vm524
      %vm529 = vmand %vm527, %vm525
      %v530 = vadd.s32 %v516, 16
      %v531 = vadd.s32 %v523, 16
      %v532 = vsel %vm528, %v530, %v516
      %v533 = vsel %vm529, %v531, %v523
      %v534 = vadd.s32 %v532, 4294967295
      %v535 = vadd.s32 %v533, 4294967295
      %vm536 = vcmp.ge.s32.totalorder %v534, 0
      %vm537 = vcmp.ge.s32.totalorder %v535, 0
      %vm538 = vcmp.lt.s32.totalorder %v534, 16
      %vm539 = vcmp.lt.s32.totalorder %v535, 16
      %vm540 = vmand %vm536, %vm538
      %vm541 = vmand %vm537, %vm539
      %v542 = vsel %vm540, 1, 0
      %v543 = vsel %vm541, 1, 0
      %vm544 = vcmp.eq.s32.totalorder %v542, 1
      %vm545 = vcmp.eq.s32.totalorder %v543, 1
      %550 = vrot.lane.b32.xlu0 %v503, 111
      %v551 = vpop.permute.xlu0 %550
      %552 = vrot.lane.b32.xlu0 %v495, 111
      %v553 = vpop.permute.xlu0 %552
      %554 = vrot.lane.b32.xlu0 %v505, 111
      %v555 = vpop.permute.xlu0 %554
      %556 = vrot.lane.b32.xlu0 %v504, 111
      %v557 = vpop.permute.xlu0 %556
      %558 = vrot.lane.b32.xlu0 %v496, 111
      %v559 = vpop.permute.xlu0 %558
      %560 = vrot.lane.b32.xlu0 %v506, 111
      %v561 = vpop.permute.xlu0 %560
      %vm562 = vcmask 908288
      %v563 = vsel %vm562, %v551, %v553
      %v564 = vsel %vm562, %v553, %v555
      %v565 = vsel %vm562, %v557, %v559
      %v566 = vsel %vm562, %v559, %v561
      %v571 = vsel %vm544, %v563, 0.0
      %v572 = vsel %vm545, %v564, 0.0
      %v573 = vsel %vm544, %v565, 0.0
      %v574 = vsel %vm545, %v566, 0.0
      %v575 = vld [vmem:[%s3] sm:$0xff]
      %v576 = vld [vmem:[%s3 + $0x8] sm:$0xff]
      %578 = vset.pattern.permute.xlu0 0
      %579 = vperm.xlu0 %578, %v575
      %v580 = vpop.permute.xlu0 %579
      %583 = vset.pattern.permute.xlu0 0
      %584 = vperm.xlu0 %583, %v576
      %v585 = vpop.permute.xlu0 %584
      %v587 = vmul.f32 %v571, %v580
      %v588 = vmul.f32 %v572, %v580
      %v589 = vmul.f32 %v573, %v585
      %v590 = vmul.f32 %v574, %v585
      %v591 = vadd.f32 %v587, 0.0
      %v592 = vadd.f32 %v588, 0.0
      %v593 = vadd.f32 %v589, 0.0
      %v594 = vadd.f32 %v590, 0.0
      %595 = vset.pattern.permute.xlu0 1
      %596 = vperm.xlu0 %595, %v575
      %v597 = vpop.permute.xlu0 %596
      %599 = vset.pattern.permute.xlu0 1
      %600 = vperm.xlu0 %599, %v576
      %v601 = vpop.permute.xlu0 %600
      %v603 = vmul.f32 %v503, %v597
      %v604 = vmul.f32 %v495, %v597
      %v605 = vmul.f32 %v505, %v597
      %v606 = vmul.f32 %v504, %v601
      %v607 = vmul.f32 %v496, %v601
      %v608 = vmul.f32 %v506, %v601
      %615 = vrot.lane.b32.xlu0 %v603, 110
      %v616 = vpop.permute.xlu0 %615
      %617 = vrot.lane.b32.xlu0 %v604, 110
      %v618 = vpop.permute.xlu0 %617
      %619 = vrot.lane.b32.xlu0 %v605, 110
      %v620 = vpop.permute.xlu0 %619
      %621 = vrot.lane.b32.xlu0 %v606, 110
      %v622 = vpop.permute.xlu0 %621
      %623 = vrot.lane.b32.xlu0 %v607, 110
      %v624 = vpop.permute.xlu0 %623
      %625 = vrot.lane.b32.xlu0 %v608, 110
      %v626 = vpop.permute.xlu0 %625
      %vm627 = vcmask 900096
      %v628 = vsel %vm627, %v616, %v618
      %v629 = vsel %vm627, %v618, %v620
      %v630 = vsel %vm627, %v622, %v624
      %v631 = vsel %vm627, %v624, %v626
      %v636 = vadd.f32 %v591, %v628
      %v637 = vadd.f32 %v592, %v629
      %v638 = vadd.f32 %v593, %v630
      %v639 = vadd.f32 %v594, %v631
      %v640 = vadd.s32 %v532, 1
      %v641 = vadd.s32 %v533, 1
      %vm642 = vcmp.ge.s32.totalorder %v640, 0
      %vm643 = vcmp.ge.s32.totalorder %v641, 0
      %vm644 = vcmp.lt.s32.totalorder %v640, 16
      %vm645 = vcmp.lt.s32.totalorder %v641, 16
      %vm646 = vmand %vm642, %vm644
      %vm647 = vmand %vm643, %vm645
      %v648 = vsel %vm646, 1, 0
      %v649 = vsel %vm647, 1, 0
      %vm650 = vcmp.eq.s32.totalorder %v648, 1
      %vm651 = vcmp.eq.s32.totalorder %v649, 1
      %652 = vrot.lane.b32.xlu0 %v503, 109
      %v653 = vpop.permute.xlu0 %652
      %654 = vrot.lane.b32.xlu0 %v495, 109
      %v655 = vpop.permute.xlu0 %654
      %656 = vrot.lane.b32.xlu0 %v505, 109
      %v657 = vpop.permute.xlu0 %656
      %658 = vrot.lane.b32.xlu0 %v504, 109
      %v659 = vpop.permute.xlu0 %658
      %660 = vrot.lane.b32.xlu0 %v496, 109
      %v661 = vpop.permute.xlu0 %660
      %662 = vrot.lane.b32.xlu0 %v506, 109
      %v663 = vpop.permute.xlu0 %662
      %vm664 = vcmask 891904
      %v665 = vsel %vm664, %v653, %v655
      %v666 = vsel %vm664, %v655, %v657
      %v667 = vsel %vm664, %v659, %v661
      %v668 = vsel %vm664, %v661, %v663
      %v673 = vsel %vm650, %v665, 0.0
      %v674 = vsel %vm651, %v666, 0.0
      %v675 = vsel %vm650, %v667, 0.0
      %v676 = vsel %vm651, %v668, 0.0
      %677 = vset.pattern.permute.xlu0 2
      %678 = vperm.xlu0 %677, %v575
      %v679 = vpop.permute.xlu0 %678
      %681 = vset.pattern.permute.xlu0 2
      %682 = vperm.xlu0 %681, %v576
      %v683 = vpop.permute.xlu0 %682
      %v685 = vmul.f32 %v673, %v679
      %v686 = vmul.f32 %v674, %v679
      %v687 = vmul.f32 %v675, %v683
      %v688 = vmul.f32 %v676, %v683
      %v689 = vadd.f32 %v636, %v685
      %v690 = vadd.f32 %v637, %v686
      %v691 = vadd.f32 %v638, %v687
      %v692 = vadd.f32 %v639, %v688
      %693 = vrot.lane.b32.xlu0 %v503, 95
      %v694 = vpop.permute.xlu0 %693
      %695 = vrot.lane.b32.xlu0 %v495, 95
      %v696 = vpop.permute.xlu0 %695
      %697 = vrot.lane.b32.xlu0 %v505, 95
      %v698 = vpop.permute.xlu0 %697
      %699 = vrot.lane.b32.xlu0 %v504, 95
      %v700 = vpop.permute.xlu0 %699
      %701 = vrot.lane.b32.xlu0 %v496, 95
      %v702 = vpop.permute.xlu0 %701
      %703 = vrot.lane.b32.xlu0 %v506, 95
      %v704 = vpop.permute.xlu0 %703
      %vm705 = vcmask 777216
      %v706 = vsel %vm705, %v694, %v696
      %v707 = vsel %vm705, %v696, %v698
      %v708 = vsel %vm705, %v700, %v702
      %v709 = vsel %vm705, %v702, %v704
      %v714 = vsel %vm544, %v706, 0.0
      %v715 = vsel %vm545, %v707, 0.0
      %v716 = vsel %vm544, %v708, 0.0
      %v717 = vsel %vm545, %v709, 0.0
      %718 = vset.pattern.permute.xlu0 3
      %719 = vperm.xlu0 %718, %v575
      %v720 = vpop.permute.xlu0 %719
      %722 = vset.pattern.permute.xlu0 3
      %723 = vperm.xlu0 %722, %v576
      %v724 = vpop.permute.xlu0 %723
      %v726 = vmul.f32 %v714, %v720
      %v727 = vmul.f32 %v715, %v720
      %v728 = vmul.f32 %v716, %v724
      %v729 = vmul.f32 %v717, %v724
      %v730 = vadd.f32 %v689, %v726
      %v731 = vadd.f32 %v690, %v727
      %v732 = vadd.f32 %v691, %v728
      %v733 = vadd.f32 %v692, %v729
      %734 = vset.pattern.permute.xlu0 4
      %735 = vperm.xlu0 %734, %v575
      %v736 = vpop.permute.xlu0 %735
      %738 = vset.pattern.permute.xlu0 4
      %739 = vperm.xlu0 %738, %v576
      %v740 = vpop.permute.xlu0 %739
      %v742 = vmul.f32 %v503, %v736
      %v743 = vmul.f32 %v495, %v736
      %v744 = vmul.f32 %v505, %v736
      %v745 = vmul.f32 %v504, %v740
      %v746 = vmul.f32 %v496, %v740
      %v747 = vmul.f32 %v506, %v740
      %754 = vrot.lane.b32.xlu0 %v742, 94
      %v755 = vpop.permute.xlu0 %754
      %756 = vrot.lane.b32.xlu0 %v743, 94
      %v757 = vpop.permute.xlu0 %756
      %758 = vrot.lane.b32.xlu0 %v744, 94
      %v759 = vpop.permute.xlu0 %758
      %760 = vrot.lane.b32.xlu0 %v745, 94
      %v761 = vpop.permute.xlu0 %760
      %762 = vrot.lane.b32.xlu0 %v746, 94
      %v763 = vpop.permute.xlu0 %762
      %764 = vrot.lane.b32.xlu0 %v747, 94
      %v765 = vpop.permute.xlu0 %764
      %vm766 = vcmask 769024
      %v767 = vsel %vm766, %v755, %v757
      %v768 = vsel %vm766, %v757, %v759
      %v769 = vsel %vm766, %v761, %v763
      %v770 = vsel %vm766, %v763, %v765
      %v775 = vadd.f32 %v730, %v767
      %v776 = vadd.f32 %v731, %v768
      %v777 = vadd.f32 %v732, %v769
      %v778 = vadd.f32 %v733, %v770
      %779 = vrot.lane.b32.xlu0 %v503, 93
      %v780 = vpop.permute.xlu0 %779
      %781 = vrot.lane.b32.xlu0 %v495, 93
      %v782 = vpop.permute.xlu0 %781
      %783 = vrot.lane.b32.xlu0 %v505, 93
      %v784 = vpop.permute.xlu0 %783
      %785 = vrot.lane.b32.xlu0 %v504, 93
      %v786 = vpop.permute.xlu0 %785
      %787 = vrot.lane.b32.xlu0 %v496, 93
      %v788 = vpop.permute.xlu0 %787
      %789 = vrot.lane.b32.xlu0 %v506, 93
      %v790 = vpop.permute.xlu0 %789
      %vm791 = vcmask 760832
      %v792 = vsel %vm791, %v780, %v782
      %v793 = vsel %vm791, %v782, %v784
      %v794 = vsel %vm791, %v786, %v788
      %v795 = vsel %vm791, %v788, %v790
      %v800 = vsel %vm650, %v792, 0.0
      %v801 = vsel %vm651, %v793, 0.0
      %v802 = vsel %vm650, %v794, 0.0
      %v803 = vsel %vm651, %v795, 0.0
      %804 = vset.pattern.permute.xlu0 5
      %805 = vperm.xlu0 %804, %v575
      %v806 = vpop.permute.xlu0 %805
      %808 = vset.pattern.permute.xlu0 5
      %809 = vperm.xlu0 %808, %v576
      %v810 = vpop.permute.xlu0 %809
      %v812 = vmul.f32 %v800, %v806
      %v813 = vmul.f32 %v801, %v806
      %v814 = vmul.f32 %v802, %v810
      %v815 = vmul.f32 %v803, %v810
      %v816 = vadd.f32 %v775, %v812
      %v817 = vadd.f32 %v776, %v813
      %v818 = vadd.f32 %v777, %v814
      %v819 = vadd.f32 %v778, %v815
      %820 = vrot.lane.b32.xlu0 %v503, 79
      %v821 = vpop.permute.xlu0 %820
      %822 = vrot.lane.b32.xlu0 %v495, 79
      %v823 = vpop.permute.xlu0 %822
      %824 = vrot.lane.b32.xlu0 %v505, 79
      %v825 = vpop.permute.xlu0 %824
      %826 = vrot.lane.b32.xlu0 %v504, 79
      %v827 = vpop.permute.xlu0 %826
      %828 = vrot.lane.b32.xlu0 %v496, 79
      %v829 = vpop.permute.xlu0 %828
      %830 = vrot.lane.b32.xlu0 %v506, 79
      %v831 = vpop.permute.xlu0 %830
      %vm832 = vcmask 646144
      %v833 = vsel %vm832, %v821, %v823
      %v834 = vsel %vm832, %v823, %v825
      %v835 = vsel %vm832, %v827, %v829
      %v836 = vsel %vm832, %v829, %v831
      %v841 = vsel %vm544, %v833, 0.0
      %v842 = vsel %vm545, %v834, 0.0
      %v843 = vsel %vm544, %v835, 0.0
      %v844 = vsel %vm545, %v836, 0.0
      %845 = vset.pattern.permute.xlu0 6
      %846 = vperm.xlu0 %845, %v575
      %v847 = vpop.permute.xlu0 %846
      %849 = vset.pattern.permute.xlu0 6
      %850 = vperm.xlu0 %849, %v576
      %v851 = vpop.permute.xlu0 %850
      %v853 = vmul.f32 %v841, %v847
      %v854 = vmul.f32 %v842, %v847
      %v855 = vmul.f32 %v843, %v851
      %v856 = vmul.f32 %v844, %v851
      %v857 = vadd.f32 %v816, %v853
      %v858 = vadd.f32 %v817, %v854
      %v859 = vadd.f32 %v818, %v855
      %v860 = vadd.f32 %v819, %v856
      %861 = vset.pattern.permute.xlu0 7
      %862 = vperm.xlu0 %861, %v575
      %v863 = vpop.permute.xlu0 %862
      %865 = vset.pattern.permute.xlu0 7
      %866 = vperm.xlu0 %865, %v576
      %v867 = vpop.permute.xlu0 %866
      %v869 = vmul.f32 %v503, %v863
      %v870 = vmul.f32 %v495, %v863
      %v871 = vmul.f32 %v505, %v863
      %v872 = vmul.f32 %v504, %v867
      %v873 = vmul.f32 %v496, %v867
      %v874 = vmul.f32 %v506, %v867
      %881 = vrot.lane.b32.xlu0 %v869, 78
      %v882 = vpop.permute.xlu0 %881
      %883 = vrot.lane.b32.xlu0 %v870, 78
      %v884 = vpop.permute.xlu0 %883
      %885 = vrot.lane.b32.xlu0 %v871, 78
      %v886 = vpop.permute.xlu0 %885
      %887 = vrot.lane.b32.xlu0 %v872, 78
      %v888 = vpop.permute.xlu0 %887
      %889 = vrot.lane.b32.xlu0 %v873, 78
      %v890 = vpop.permute.xlu0 %889
      %891 = vrot.lane.b32.xlu0 %v874, 78
      %v892 = vpop.permute.xlu0 %891
      %vm893 = vcmask 637952
      %v894 = vsel %vm893, %v882, %v884
      %v895 = vsel %vm893, %v884, %v886
      %v896 = vsel %vm893, %v888, %v890
      %v897 = vsel %vm893, %v890, %v892
      %v902 = vadd.f32 %v857, %v894
      %v903 = vadd.f32 %v858, %v895
      %v904 = vadd.f32 %v859, %v896
      %v905 = vadd.f32 %v860, %v897
      %906 = vrot.lane.b32.xlu0 %v503, 77
      %v907 = vpop.permute.xlu0 %906
      %908 = vrot.lane.b32.xlu0 %v495, 77
      %v909 = vpop.permute.xlu0 %908
      %910 = vrot.lane.b32.xlu0 %v505, 77
      %v911 = vpop.permute.xlu0 %910
      %912 = vrot.lane.b32.xlu0 %v504, 77
      %v913 = vpop.permute.xlu0 %912
      %914 = vrot.lane.b32.xlu0 %v496, 77
      %v915 = vpop.permute.xlu0 %914
      %916 = vrot.lane.b32.xlu0 %v506, 77
      %v917 = vpop.permute.xlu0 %916
      %vm918 = vcmask 629760
      %v919 = vsel %vm918, %v907, %v909
      %v920 = vsel %vm918, %v909, %v911
      %v921 = vsel %vm918, %v913, %v915
      %v922 = vsel %vm918, %v915, %v917
      %v927 = vsel %vm650, %v919, 0.0
      %v928 = vsel %vm651, %v920, 0.0
      %v929 = vsel %vm650, %v921, 0.0
      %v930 = vsel %vm651, %v922, 0.0
      %931 = vset.pattern.permute.xlu0 8
      %932 = vperm.xlu0 %931, %v575
      %v933 = vpop.permute.xlu0 %932
      %935 = vset.pattern.permute.xlu0 8
      %936 = vperm.xlu0 %935, %v576
      %v937 = vpop.permute.xlu0 %936
      %v939 = vmul.f32 %v927, %v933
      %v940 = vmul.f32 %v928, %v933
      %v941 = vmul.f32 %v929, %v937
      %v942 = vmul.f32 %v930, %v937
      %v943 = vadd.f32 %v902, %v939
      %v944 = vadd.f32 %v903, %v940
      %v945 = vadd.f32 %v904, %v941
      %v946 = vadd.f32 %v905, %v942
      %v947 = vadd.s32 %v532, 4294967294
      %v948 = vadd.s32 %v533, 4294967294
      %vm949 = vcmp.ge.s32.totalorder %v947, 0
      %vm950 = vcmp.ge.s32.totalorder %v948, 0
      %vm951 = vcmp.lt.s32.totalorder %v947, 16
      %vm952 = vcmp.lt.s32.totalorder %v948, 16
      %vm953 = vmand %vm949, %vm951
      %vm954 = vmand %vm950, %vm952
      %v955 = vsel %vm953, 1, 0
      %v956 = vsel %vm954, 1, 0
      %vm957 = vcmp.eq.s32.totalorder %v955, 1
      %vm958 = vcmp.eq.s32.totalorder %v956, 1
      %v959 = vsel %vm957, %v503, 0.0
      %v960 = vsel %vm958, %v495, 0.0
      %v961 = vsel %vm957, %v504, 0.0
      %v962 = vsel %vm958, %v496, 0.0
      %v963 = vld [vmem:[%s4] sm:$0xff]
      %v964 = vld [vmem:[%s4 + $0x8] sm:$0xff]
      %966 = vset.pattern.permute.xlu0 0
      %967 = vperm.xlu0 %966, %v963
      %v968 = vpop.permute.xlu0 %967
      %971 = vset.pattern.permute.xlu0 0
      %972 = vperm.xlu0 %971, %v964
      %v973 = vpop.permute.xlu0 %972
      %v975 = vmul.f32 %v959, %v968
      %v976 = vmul.f32 %v960, %v968
      %v977 = vmul.f32 %v961, %v973
      %v978 = vmul.f32 %v962, %v973
      %v979 = vadd.f32 %v975, 0.0
      %v980 = vadd.f32 %v976, 0.0
      %v981 = vadd.f32 %v977, 0.0
      %v982 = vadd.f32 %v978, 0.0
      %983 = vset.pattern.permute.xlu0 1
      %984 = vperm.xlu0 %983, %v963
      %v985 = vpop.permute.xlu0 %984
      %987 = vset.pattern.permute.xlu0 1
      %988 = vperm.xlu0 %987, %v964
      %v989 = vpop.permute.xlu0 %988
      %v991 = vmul.f32 %v503, %v985
      %v992 = vmul.f32 %v495, %v985
      %v993 = vmul.f32 %v505, %v985
      %v994 = vmul.f32 %v504, %v989
      %v995 = vmul.f32 %v496, %v989
      %v996 = vmul.f32 %v506, %v989
      %1003 = vrot.lane.b32.xlu0 %v991, 126
      %v1004 = vpop.permute.xlu0 %1003
      %1005 = vrot.lane.b32.xlu0 %v992, 126
      %v1006 = vpop.permute.xlu0 %1005
      %1007 = vrot.lane.b32.xlu0 %v993, 126
      %v1008 = vpop.permute.xlu0 %1007
      %1009 = vrot.lane.b32.xlu0 %v994, 126
      %v1010 = vpop.permute.xlu0 %1009
      %1011 = vrot.lane.b32.xlu0 %v995, 126
      %v1012 = vpop.permute.xlu0 %1011
      %1013 = vrot.lane.b32.xlu0 %v996, 126
      %v1014 = vpop.permute.xlu0 %1013
      %vm1015 = vcmask 1031168
      %v1016 = vsel %vm1015, %v1004, %v1006
      %v1017 = vsel %vm1015, %v1006, %v1008
      %v1018 = vsel %vm1015, %v1010, %v1012
      %v1019 = vsel %vm1015, %v1012, %v1014
      %v1024 = vadd.f32 %v979, %v1016
      %v1025 = vadd.f32 %v980, %v1017
      %v1026 = vadd.f32 %v981, %v1018
      %v1027 = vadd.f32 %v982, %v1019
      %v1028 = vadd.s32 %v532, 2
      %v1029 = vadd.s32 %v533, 2
      %vm1030 = vcmp.ge.s32.totalorder %v1028, 0
      %vm1031 = vcmp.ge.s32.totalorder %v1029, 0
      %vm1032 = vcmp.lt.s32.totalorder %v1028, 16
      %vm1033 = vcmp.lt.s32.totalorder %v1029, 16
      %vm1034 = vmand %vm1030, %vm1032
      %vm1035 = vmand %vm1031, %vm1033
      %v1036 = vsel %vm1034, 1, 0
      %v1037 = vsel %vm1035, 1, 0
      %vm1038 = vcmp.eq.s32.totalorder %v1036, 1
      %vm1039 = vcmp.eq.s32.totalorder %v1037, 1
      %1040 = vrot.lane.b32.xlu0 %v503, 124
      %v1041 = vpop.permute.xlu0 %1040
      %1042 = vrot.lane.b32.xlu0 %v495, 124
      %v1043 = vpop.permute.xlu0 %1042
      %1044 = vrot.lane.b32.xlu0 %v505, 124
      %v1045 = vpop.permute.xlu0 %1044
      %1046 = vrot.lane.b32.xlu0 %v504, 124
      %v1047 = vpop.permute.xlu0 %1046
      %1048 = vrot.lane.b32.xlu0 %v496, 124
      %v1049 = vpop.permute.xlu0 %1048
      %1050 = vrot.lane.b32.xlu0 %v506, 124
      %v1051 = vpop.permute.xlu0 %1050
      %vm1052 = vcmask 1014784
      %v1053 = vsel %vm1052, %v1041, %v1043
      %v1054 = vsel %vm1052, %v1043, %v1045
      %v1055 = vsel %vm1052, %v1047, %v1049
      %v1056 = vsel %vm1052, %v1049, %v1051
      %v1061 = vsel %vm1038, %v1053, 0.0
      %v1062 = vsel %vm1039, %v1054, 0.0
      %v1063 = vsel %vm1038, %v1055, 0.0
      %v1064 = vsel %vm1039, %v1056, 0.0
      %1065 = vset.pattern.permute.xlu0 2
      %1066 = vperm.xlu0 %1065, %v963
      %v1067 = vpop.permute.xlu0 %1066
      %1069 = vset.pattern.permute.xlu0 2
      %1070 = vperm.xlu0 %1069, %v964
      %v1071 = vpop.permute.xlu0 %1070
      %v1073 = vmul.f32 %v1061, %v1067
      %v1074 = vmul.f32 %v1062, %v1067
      %v1075 = vmul.f32 %v1063, %v1071
      %v1076 = vmul.f32 %v1064, %v1071
      %v1077 = vadd.f32 %v1024, %v1073
      %v1078 = vadd.f32 %v1025, %v1074
      %v1079 = vadd.f32 %v1026, %v1075
      %v1080 = vadd.f32 %v1027, %v1076
      %1081 = vrot.lane.b32.xlu0 %v503, 96
      %v1082 = vpop.permute.xlu0 %1081
      %1083 = vrot.lane.b32.xlu0 %v495, 96
      %v1084 = vpop.permute.xlu0 %1083
      %1085 = vrot.lane.b32.xlu0 %v505, 96
      %v1086 = vpop.permute.xlu0 %1085
      %1087 = vrot.lane.b32.xlu0 %v504, 96
      %v1088 = vpop.permute.xlu0 %1087
      %1089 = vrot.lane.b32.xlu0 %v496, 96
      %v1090 = vpop.permute.xlu0 %1089
      %1091 = vrot.lane.b32.xlu0 %v506, 96
      %v1092 = vpop.permute.xlu0 %1091
      %vm1093 = vcmask 785408
      %v1094 = vsel %vm1093, %v1082, %v1084
      %v1095 = vsel %vm1093, %v1084, %v1086
      %v1096 = vsel %vm1093, %v1088, %v1090
      %v1097 = vsel %vm1093, %v1090, %v1092
      %v1102 = vsel %vm957, %v1094, 0.0
      %v1103 = vsel %vm958, %v1095, 0.0
      %v1104 = vsel %vm957, %v1096, 0.0
      %v1105 = vsel %vm958, %v1097, 0.0
      %1106 = vset.pattern.permute.xlu0 3
      %1107 = vperm.xlu0 %1106, %v963
      %v1108 = vpop.permute.xlu0 %1107
      %1110 = vset.pattern.permute.xlu0 3
      %1111 = vperm.xlu0 %1110, %v964
      %v1112 = vpop.permute.xlu0 %1111
      %v1114 = vmul.f32 %v1102, %v1108
      %v1115 = vmul.f32 %v1103, %v1108
      %v1116 = vmul.f32 %v1104, %v1112
      %v1117 = vmul.f32 %v1105, %v1112
      %v1118 = vadd.f32 %v1077, %v1114
      %v1119 = vadd.f32 %v1078, %v1115
      %v1120 = vadd.f32 %v1079, %v1116
      %v1121 = vadd.f32 %v1080, %v1117
      %1122 = vset.pattern.permute.xlu0 4
      %1123 = vperm.xlu0 %1122, %v963
      %v1124 = vpop.permute.xlu0 %1123
      %1126 = vset.pattern.permute.xlu0 4
      %1127 = vperm.xlu0 %1126, %v964
      %v1128 = vpop.permute.xlu0 %1127
      %v1130 = vmul.f32 %v503, %v1124
      %v1131 = vmul.f32 %v495, %v1124
      %v1132 = vmul.f32 %v505, %v1124
      %v1133 = vmul.f32 %v504, %v1128
      %v1134 = vmul.f32 %v496, %v1128
      %v1135 = vmul.f32 %v506, %v1128
      %1142 = vrot.lane.b32.xlu0 %v1130, 94
      %v1143 = vpop.permute.xlu0 %1142
      %1144 = vrot.lane.b32.xlu0 %v1131, 94
      %v1145 = vpop.permute.xlu0 %1144
      %1146 = vrot.lane.b32.xlu0 %v1132, 94
      %v1147 = vpop.permute.xlu0 %1146
      %1148 = vrot.lane.b32.xlu0 %v1133, 94
      %v1149 = vpop.permute.xlu0 %1148
      %1150 = vrot.lane.b32.xlu0 %v1134, 94
      %v1151 = vpop.permute.xlu0 %1150
      %1152 = vrot.lane.b32.xlu0 %v1135, 94
      %v1153 = vpop.permute.xlu0 %1152
      %v1154 = vsel %vm766, %v1143, %v1145
      %v1155 = vsel %vm766, %v1145, %v1147
      %v1156 = vsel %vm766, %v1149, %v1151
      %v1157 = vsel %vm766, %v1151, %v1153
      %v1162 = vadd.f32 %v1118, %v1154
      %v1163 = vadd.f32 %v1119, %v1155
      %v1164 = vadd.f32 %v1120, %v1156
      %v1165 = vadd.f32 %v1121, %v1157
      %1166 = vrot.lane.b32.xlu0 %v503, 92
      %v1167 = vpop.permute.xlu0 %1166
      %1168 = vrot.lane.b32.xlu0 %v495, 92
      %v1169 = vpop.permute.xlu0 %1168
      %1170 = vrot.lane.b32.xlu0 %v505, 92
      %v1171 = vpop.permute.xlu0 %1170
      %1172 = vrot.lane.b32.xlu0 %v504, 92
      %v1173 = vpop.permute.xlu0 %1172
      %1174 = vrot.lane.b32.xlu0 %v496, 92
      %v1175 = vpop.permute.xlu0 %1174
      %1176 = vrot.lane.b32.xlu0 %v506, 92
      %v1177 = vpop.permute.xlu0 %1176
      %vm1178 = vcmask 752640
      %v1179 = vsel %vm1178, %v1167, %v1169
      %v1180 = vsel %vm1178, %v1169, %v1171
      %v1181 = vsel %vm1178, %v1173, %v1175
      %v1182 = vsel %vm1178, %v1175, %v1177
      %v1187 = vsel %vm1038, %v1179, 0.0
      %v1188 = vsel %vm1039, %v1180, 0.0
      %v1189 = vsel %vm1038, %v1181, 0.0
      %v1190 = vsel %vm1039, %v1182, 0.0
      %1191 = vset.pattern.permute.xlu0 5
      %1192 = vperm.xlu0 %1191, %v963
      %v1193 = vpop.permute.xlu0 %1192
      %1195 = vset.pattern.permute.xlu0 5
      %1196 = vperm.xlu0 %1195, %v964
      %v1197 = vpop.permute.xlu0 %1196
      %v1199 = vmul.f32 %v1187, %v1193
      %v1200 = vmul.f32 %v1188, %v1193
      %v1201 = vmul.f32 %v1189, %v1197
      %v1202 = vmul.f32 %v1190, %v1197
      %v1203 = vadd.f32 %v1162, %v1199
      %v1204 = vadd.f32 %v1163, %v1200
      %v1205 = vadd.f32 %v1164, %v1201
      %v1206 = vadd.f32 %v1165, %v1202
      %1207 = vrot.lane.b32.xlu0 %v503, 64
      %v1208 = vpop.permute.xlu0 %1207
      %1209 = vrot.lane.b32.xlu0 %v495, 64
      %v1210 = vpop.permute.xlu0 %1209
      %1211 = vrot.lane.b32.xlu0 %v505, 64
      %v1212 = vpop.permute.xlu0 %1211
      %1213 = vrot.lane.b32.xlu0 %v504, 64
      %v1214 = vpop.permute.xlu0 %1213
      %1215 = vrot.lane.b32.xlu0 %v496, 64
      %v1216 = vpop.permute.xlu0 %1215
      %1217 = vrot.lane.b32.xlu0 %v506, 64
      %v1218 = vpop.permute.xlu0 %1217
      %vm1219 = vcmask 523264
      %v1220 = vsel %vm1219, %v1208, %v1210
      %v1221 = vsel %vm1219, %v1210, %v1212
      %v1222 = vsel %vm1219, %v1214, %v1216
      %v1223 = vsel %vm1219, %v1216, %v1218
      %v1228 = vsel %vm957, %v1220, 0.0
      %v1229 = vsel %vm958, %v1221, 0.0
      %v1230 = vsel %vm957, %v1222, 0.0
      %v1231 = vsel %vm958, %v1223, 0.0
      %1232 = vset.pattern.permute.xlu0 6
      %1233 = vperm.xlu0 %1232, %v963
      %v1234 = vpop.permute.xlu0 %1233
      %1236 = vset.pattern.permute.xlu0 6
      %1237 = vperm.xlu0 %1236, %v964
      %v1238 = vpop.permute.xlu0 %1237
      %v1240 = vmul.f32 %v1228, %v1234
      %v1241 = vmul.f32 %v1229, %v1234
      %v1242 = vmul.f32 %v1230, %v1238
      %v1243 = vmul.f32 %v1231, %v1238
      %v1244 = vadd.f32 %v1203, %v1240
      %v1245 = vadd.f32 %v1204, %v1241
      %v1246 = vadd.f32 %v1205, %v1242
      %v1247 = vadd.f32 %v1206, %v1243
      %1248 = vset.pattern.permute.xlu0 7
      %1249 = vperm.xlu0 %1248, %v963
      %v1250 = vpop.permute.xlu0 %1249
      %1252 = vset.pattern.permute.xlu0 7
      %1253 = vperm.xlu0 %1252, %v964
      %v1254 = vpop.permute.xlu0 %1253
      %v1256 = vmul.f32 %v503, %v1250
      %v1257 = vmul.f32 %v495, %v1250
      %v1258 = vmul.f32 %v505, %v1250
      %v1259 = vmul.f32 %v504, %v1254
      %v1260 = vmul.f32 %v496, %v1254
      %v1261 = vmul.f32 %v506, %v1254
      %1268 = vrot.lane.b32.xlu0 %v1256, 62
      %v1269 = vpop.permute.xlu0 %1268
      %1270 = vrot.lane.b32.xlu0 %v1257, 62
      %v1271 = vpop.permute.xlu0 %1270
      %1272 = vrot.lane.b32.xlu0 %v1258, 62
      %v1273 = vpop.permute.xlu0 %1272
      %1274 = vrot.lane.b32.xlu0 %v1259, 62
      %v1275 = vpop.permute.xlu0 %1274
      %1276 = vrot.lane.b32.xlu0 %v1260, 62
      %v1277 = vpop.permute.xlu0 %1276
      %1278 = vrot.lane.b32.xlu0 %v1261, 62
      %v1279 = vpop.permute.xlu0 %1278
      %vm1280 = vcmask 506880
      %v1281 = vsel %vm1280, %v1269, %v1271
      %v1282 = vsel %vm1280, %v1271, %v1273
      %v1283 = vsel %vm1280, %v1275, %v1277
      %v1284 = vsel %vm1280, %v1277, %v1279
      %v1289 = vadd.f32 %v1244, %v1281
      %v1290 = vadd.f32 %v1245, %v1282
      %v1291 = vadd.f32 %v1246, %v1283
      %v1292 = vadd.f32 %v1247, %v1284
      %1293 = vrot.lane.b32.xlu0 %v503, 60
      %v1294 = vpop.permute.xlu0 %1293
      %1295 = vrot.lane.b32.xlu0 %v495, 60
      %v1296 = vpop.permute.xlu0 %1295
      %1297 = vrot.lane.b32.xlu0 %v505, 60
      %v1298 = vpop.permute.xlu0 %1297
      %1299 = vrot.lane.b32.xlu0 %v504, 60
      %v1300 = vpop.permute.xlu0 %1299
      %1301 = vrot.lane.b32.xlu0 %v496, 60
      %v1302 = vpop.permute.xlu0 %1301
      %1303 = vrot.lane.b32.xlu0 %v506, 60
      %v1304 = vpop.permute.xlu0 %1303
      %vm1305 = vcmask 490496
      %v1306 = vsel %vm1305, %v1294, %v1296
      %v1307 = vsel %vm1305, %v1296, %v1298
      %v1308 = vsel %vm1305, %v1300, %v1302
      %v1309 = vsel %vm1305, %v1302, %v1304
      %v1314 = vsel %vm1038, %v1306, 0.0
      %v1315 = vsel %vm1039, %v1307, 0.0
      %v1316 = vsel %vm1038, %v1308, 0.0
      %v1317 = vsel %vm1039, %v1309, 0.0
      %1318 = vset.pattern.permute.xlu0 8
      %1319 = vperm.xlu0 %1318, %v963
      %v1320 = vpop.permute.xlu0 %1319
      %1322 = vset.pattern.permute.xlu0 8
      %1323 = vperm.xlu0 %1322, %v964
      %v1324 = vpop.permute.xlu0 %1323
      %v1326 = vmul.f32 %v1314, %v1320
      %v1327 = vmul.f32 %v1315, %v1320
      %v1328 = vmul.f32 %v1316, %v1324
      %v1329 = vmul.f32 %v1317, %v1324
      %v1330 = vadd.f32 %v1289, %v1326
      %v1331 = vadd.f32 %v1290, %v1327
      %v1332 = vadd.f32 %v1291, %v1328
      %v1333 = vadd.f32 %v1292, %v1329
      %v1334 = vld [vmem:[%s5] sm:$0xff]
      %v1335 = vld [vmem:[%s5 + $0x8] sm:$0xff]
      %1337 = vset.pattern.permute.xlu0 0
      %1338 = vperm.xlu0 %1337, %v1334
      %v1339 = vpop.permute.xlu0 %1338
      %1342 = vset.pattern.permute.xlu0 0
      %1343 = vperm.xlu0 %1342, %v1335
      %v1344 = vpop.permute.xlu0 %1343
      %v1346 = vadd.f32 %v943, %v1339
      %v1347 = vadd.f32 %v944, %v1339
      %v1348 = vadd.f32 %v945, %v1344
      %v1349 = vadd.f32 %v946, %v1344
      %vm1350 = vcmp.ge.f32.partialorder %v1346, 0.0
      %vm1351 = vcmp.ge.f32.partialorder %v1347, 0.0
      %vm1352 = vcmp.ge.f32.partialorder %v1348, 0.0
      %vm1353 = vcmp.ge.f32.partialorder %v1349, 0.0
      %1354 = vset.pattern.permute.xlu0 1
      %1355 = vperm.xlu0 %1354, %v1334
      %v1356 = vpop.permute.xlu0 %1355
      %1358 = vset.pattern.permute.xlu0 1
      %1359 = vperm.xlu0 %1358, %v1335
      %v1360 = vpop.permute.xlu0 %1359
      %v1362 = vmul.f32 %v1356, %v1346
      %v1363 = vmul.f32 %v1356, %v1347
      %v1364 = vmul.f32 %v1360, %v1348
      %v1365 = vmul.f32 %v1360, %v1349
      %v1366 = vsel %vm1350, %v1346, %v1362
      %v1367 = vsel %vm1351, %v1347, %v1363
      %v1368 = vsel %vm1352, %v1348, %v1364
      %v1369 = vsel %vm1353, %v1349, %v1365
      %v1370 = vld [vmem:[%s6] sm:$0xff]
      %v1371 = vld [vmem:[%s6 + $0x8] sm:$0xff]
      %1373 = vset.pattern.permute.xlu0 0
      %1374 = vperm.xlu0 %1373, %v1370
      %v1375 = vpop.permute.xlu0 %1374
      %1378 = vset.pattern.permute.xlu0 0
      %1379 = vperm.xlu0 %1378, %v1371
      %v1380 = vpop.permute.xlu0 %1379
      %v1382 = vadd.f32 %v1330, %v1375
      %v1383 = vadd.f32 %v1331, %v1375
      %v1384 = vadd.f32 %v1332, %v1380
      %v1385 = vadd.f32 %v1333, %v1380
      %vm1386 = vcmp.ge.f32.partialorder %v1382, 0.0
      %vm1387 = vcmp.ge.f32.partialorder %v1383, 0.0
      %vm1388 = vcmp.ge.f32.partialorder %v1384, 0.0
      %vm1389 = vcmp.ge.f32.partialorder %v1385, 0.0
      %1390 = vset.pattern.permute.xlu0 1
      %1391 = vperm.xlu0 %1390, %v1370
      %v1392 = vpop.permute.xlu0 %1391
      %1394 = vset.pattern.permute.xlu0 1
      %1395 = vperm.xlu0 %1394, %v1371
      %v1396 = vpop.permute.xlu0 %1395
      %v1398 = vmul.f32 %v1392, %v1382
      %v1399 = vmul.f32 %v1392, %v1383
      %v1400 = vmul.f32 %v1396, %v1384
      %v1401 = vmul.f32 %v1396, %v1385
      %v1402 = vsel %vm1386, %v1382, %v1398
      %v1403 = vsel %vm1387, %v1383, %v1399
      %v1404 = vsel %vm1388, %v1384, %v1400
      %v1405 = vsel %vm1389, %v1385, %v1401
      %v1406 = vadd.f32 %v1366, %v1367
      %1407 = vadd.xlane.f32.xlu0 %v1406
      %v1408 = vpop.xlane.xlu0 %1407
      %v1409 = vadd.f32 %v1368, %v1369
      %1410 = vadd.xlane.f32.xlu0 %v1409
      %v1411 = vpop.xlane.xlu0 %1410
      %v1412 = vadd.f32 %v1402, %v1403
      %1413 = vadd.xlane.f32.xlu0 %v1412
      %v1414 = vpop.xlane.xlu0 %1413
      %v1415 = vadd.f32 %v1404, %v1405
      %1416 = vadd.xlane.f32.xlu0 %v1415
      %v1417 = vpop.xlane.xlu0 %1416
      %v1418 = vmul.f32 %v1408, 0.00390625
      %v1419 = vmul.f32 %v1411, 0.00390625
      %v1420 = vmul.f32 %v1414, 0.00390625
      %v1421 = vmul.f32 %v1417, 0.00390625
      %v1422 = vld [vmem:[%s7] sm:$0xff]
      %v1423 = vld [vmem:[%s7 + $0x8] sm:$0xff]
      %v1424 = vld [vmem:[%s7 + $0x10] sm:$0xff]
      %v1425 = vld [vmem:[%s7 + $0x18] sm:$0xff]
      %1427 = vset.pattern.permute.xlu0 0
      %1428 = vperm.xlu0 %1427, %v1418
      %v1429 = vpop.permute.xlu0 %1428
      %1432 = vset.pattern.permute.xlu0 0
      %1433 = vperm.xlu0 %1432, %v1419
      %v1434 = vpop.permute.xlu0 %1433
      %1437 = vset.pattern.permute.xlu0 0
      %1438 = vperm.xlu0 %1437, %v1420
      %v1439 = vpop.permute.xlu0 %1438
      %1442 = vset.pattern.permute.xlu0 0
      %1443 = vperm.xlu0 %1442, %v1421
      %v1444 = vpop.permute.xlu0 %1443
      %v1446 = vmul.f32 %v1429, %v1422
      %v1447 = vmul.f32 %v1434, %v1423
      %v1448 = vmul.f32 %v1439, %v1424
      %v1449 = vmul.f32 %v1444, %v1425
      %vm1450 = vcmask 15360
      %v1451 = vsel %vm1450, %v1446, 0.0
      %v1452 = vsel %vm1450, %v1447, 0.0
      %v1453 = vadd.f32 %v1451, %v1452
      %v1454 = vsel %vm1450, %v1448, 0.0
      %v1455 = vadd.f32 %v1453, %v1454
      %v1456 = vsel %vm1450, %v1449, 0.0
      %v1457 = vadd.f32 %v1455, %v1456
      %v1458 = vrot.slane %v1457, 4
      %v1459 = vadd.f32 %v1457, %v1458
      %v1460 = vrot.slane %v1459, 2
      %v1461 = vadd.f32 %v1459, %v1460
      %v1462 = vrot.slane %v1461, 1
      %v1463 = vadd.f32 %v1461, %v1462
      %v1464 = vld [vmem:[%s8] sm:$0x1]
      %v1465 = vadd.f32 %v1463, %v1464
      %v1466 = vmax.f32 %v1465, 0.0
      %v1467 = vld [vmem:[%s9] sm:$0xff]
      %v1468 = vld [vmem:[%s9 + $0x8] sm:$0xff]
      %v1469 = vld [vmem:[%s9 + $0x10] sm:$0xff]
      %v1470 = vld [vmem:[%s9 + $0x18] sm:$0xff]
      %v1471 = vperm.slane %v1466, 0
      %v1472 = vmul.f32 %v1467, %v1471
      %v1473 = vmul.f32 %v1468, %v1471
      %v1474 = vmul.f32 %v1469, %v1471
      %v1475 = vmul.f32 %v1470, %v1471
      %v1476 = vsel %vm1450, %v1472, 0.0
      %1477 = vadd.xlane.f32.xlu0 %v1476
      %v1478 = vpop.xlane.xlu0 %1477
      %v1479 = vsel %vm1450, %v1473, 0.0
      %1480 = vadd.xlane.f32.xlu0 %v1479
      %v1481 = vpop.xlane.xlu0 %1480
      %v1482 = vsel %vm1450, %v1474, 0.0
      %1483 = vadd.xlane.f32.xlu0 %v1482
      %v1484 = vpop.xlane.xlu0 %1483
      %v1485 = vsel %vm1450, %v1475, 0.0
      %1486 = vadd.xlane.f32.xlu0 %v1485
      %v1487 = vpop.xlane.xlu0 %1486
      %v1488 = vld [vmem:[%s10] sm:$0xff]
      %v1489 = vld [vmem:[%s10 + $0x8] sm:$0xff]
      %v1490 = vld [vmem:[%s10 + $0x10] sm:$0xff]
      %v1491 = vld [vmem:[%s10 + $0x18] sm:$0xff]
      %v1492 = vadd.f32 %v1478, %v1488
      %v1493 = vadd.f32 %v1481, %v1489
      %v1494 = vadd.f32 %v1484, %v1490
      %v1495 = vadd.f32 %v1487, %v1491
      %v1496 = vxor.u32 %v1492, 2147483648
      %v1497 = vxor.u32 %v1493, 2147483648
      %v1498 = vxor.u32 %v1494, 2147483648
      %v1499 = vxor.u32 %v1495, 2147483648
      %v1500 = vmul.f32 %v1496, 1.442695
      %v1501 = vpow.pop %v1500
      %v1502 = vmul.f32 %v1497, 1.442695
      %v1503 = vpow.pop %v1502
      %v1504 = vmul.f32 %v1498, 1.442695
      %v1505 = vpow.pop %v1504
      %v1506 = vmul.f32 %v1499, 1.442695
      %v1507 = vpow.pop %v1506
      %v1508 = vadd.f32 %v1501, 1.0
      %v1509 = vadd.f32 %v1503, 1.0
      %v1510 = vadd.f32 %v1505, 1.0
      %v1511 = vadd.f32 %v1507, 1.0
      %v1512 = vrcp.pop %v1508
      %v1513 = vmul.f32 %v1508, %v1512
      %v1514 = vsub.f32 1.0, %v1513
      %v1515 = vmul.f32 %v1512, %v1514
      %v1516 = vadd.f32 %v1512, %v1515
      %vm1517 = vweird.f32 %v1508
      %vm1518 = vweird.f32 %v1512
      %vm1519 = vmor %vm1517, %vm1518
      %v1520 = vsel %vm1519, %v1512, %v1516
      %v1521 = vand.u32 2147483647, %v1508
      %vm1522 = vcmp.eq.f32.partialorder %v1521, 8.507059e+37
      %v1523 = vand.u32 %v1508, 2147483648
      %v1524 = vor.u32 1.1754944e-38, %v1523
      %v1525 = vsel %vm1522, %v1524, %v1520
      %v1526 = vmul.f32 1.0, %v1525
      %v1527 = vrcp.pop %v1509
      %v1528 = vmul.f32 %v1509, %v1527
      %v1529 = vsub.f32 1.0, %v1528
      %v1530 = vmul.f32 %v1527, %v1529
      %v1531 = vadd.f32 %v1527, %v1530
      %vm1532 = vweird.f32 %v1509
      %vm1533 = vweird.f32 %v1527
      %vm1534 = vmor %vm1532, %vm1533
      %v1535 = vsel %vm1534, %v1527, %v1531
      %v1536 = vand.u32 2147483647, %v1509
      %vm1537 = vcmp.eq.f32.partialorder %v1536, 8.507059e+37
      %v1538 = vand.u32 %v1509, 2147483648
      %v1539 = vor.u32 1.1754944e-38, %v1538
      %v1540 = vsel %vm1537, %v1539, %v1535
      %v1541 = vmul.f32 1.0, %v1540
      %v1542 = vrcp.pop %v1510
      %v1543 = vmul.f32 %v1510, %v1542
      %v1544 = vsub.f32 1.0, %v1543
      %v1545 = vmul.f32 %v1542, %v1544
      %v1546 = vadd.f32 %v1542, %v1545
      %vm1547 = vweird.f32 %v1510
      %vm1548 = vweird.f32 %v1542
      %vm1549 = vmor %vm1547, %vm1548
      %v1550 = vsel %vm1549, %v1542, %v1546
      %v1551 = vand.u32 2147483647, %v1510
      %vm1552 = vcmp.eq.f32.partialorder %v1551, 8.507059e+37
      %v1553 = vand.u32 %v1510, 2147483648
      %v1554 = vor.u32 1.1754944e-38, %v1553
      %v1555 = vsel %vm1552, %v1554, %v1550
      %v1556 = vmul.f32 1.0, %v1555
      %v1557 = vrcp.pop %v1511
      %v1558 = vmul.f32 %v1511, %v1557
      %v1559 = vsub.f32 1.0, %v1558
      %v1560 = vmul.f32 %v1557, %v1559
      %v1561 = vadd.f32 %v1557, %v1560
      %vm1562 = vweird.f32 %v1511
      %vm1563 = vweird.f32 %v1557
      %vm1564 = vmor %vm1562, %vm1563
      %v1565 = vsel %vm1564, %v1557, %v1561
      %v1566 = vand.u32 2147483647, %v1511
      %vm1567 = vcmp.eq.f32.partialorder %v1566, 8.507059e+37
      %v1568 = vand.u32 %v1511, 2147483648
      %v1569 = vor.u32 1.1754944e-38, %v1568
      %v1570 = vsel %vm1567, %v1569, %v1565
      %v1571 = vmul.f32 1.0, %v1570
      %1573 = vset.pattern.permute.xlu0 0
      %1574 = vperm.xlu0 %1573, %v1526
      %v1575 = vpop.permute.xlu0 %1574
      %1578 = vset.pattern.permute.xlu0 0
      %1579 = vperm.xlu0 %1578, %v1541
      %v1580 = vpop.permute.xlu0 %1579
      %v1582 = vmul.f32 %v1366, %v1575
      %v1583 = vmul.f32 %v1367, %v1575
      %v1584 = vmul.f32 %v1368, %v1580
      %v1585 = vmul.f32 %v1369, %v1580
      %1587 = vset.pattern.permute.xlu0 0
      %1588 = vperm.xlu0 %1587, %v1556
      %v1589 = vpop.permute.xlu0 %1588
      %1592 = vset.pattern.permute.xlu0 0
      %1593 = vperm.xlu0 %1592, %v1571
      %v1594 = vpop.permute.xlu0 %1593
      %v1596 = vmul.f32 %v1402, %v1589
      %v1597 = vmul.f32 %v1403, %v1589
      %v1598 = vmul.f32 %v1404, %v1594
      %v1599 = vmul.f32 %v1405, %v1594
      %v1600 = vadd.f32 %v1582, %v387
      %v1601 = vadd.f32 %v1583, %v388
      %v1602 = vadd.f32 %v1584, %v389
      %v1603 = vadd.f32 %v1585, %v390
      %v1604 = vadd.f32 %v1596, %v391
      %v1605 = vadd.f32 %v1597, %v392
      %v1606 = vadd.f32 %v1598, %v393
      %v1607 = vadd.f32 %v1599, %v394
      %1608 = vst [vmem:[%s386] sm:$0xff] %v1600
      %1609 = vst [vmem:[%s386 + $0x8] sm:$0xff] %v1601
      %1610 = vst [vmem:[%s386 + $0x10] sm:$0xff] %v1602
      %1611 = vst [vmem:[%s386 + $0x18] sm:$0xff] %v1603
      %1612 = vst [vmem:[%s386 + $0x20] sm:$0xff] %v1604
      %1613 = vst [vmem:[%s386 + $0x28] sm:$0xff] %v1605
      %1614 = vst [vmem:[%s386 + $0x30] sm:$0xff] %v1606
      %1615 = vst [vmem:[%s386 + $0x38] sm:$0xff] %v1607
      %p1616 = scmp.lt.s32.totalorder %s22, 1
      %s1617 = scalar_select %p1616, %s22, 1
      %s1618 = smul.addr %s1617, 8
      %s1619 = smul.addr %s1618, 8
      %s1620 = scalar_lea.vmem %s11, %s1619
      // Predicated region
      $region65: #{context_guided_forward.1} parent=63 // pred_check
        %p1621 = pneg %p276
      $region66: #{context_guided_forward.1} parent=63 // pred_check_branch
        %1623 = sbr.rel (%p1621) target = $region68
      $region67: #{context_guided_forward.1} parent=63 // pred_region
        _
      $region68: #{context_guided_forward.1} parent=63 // pred_fallthru
        _
    $region64: #{context_guided_forward.1} parent=5 // pred_fallthru
      _
    %p1624 = scmp.le.s32.totalorder 2, %s17
    // Predicated region
    $region69: #{context_guided_forward.1} parent=5 // pred_check
      %p1625 = pneg %p1624
    $region70: #{context_guided_forward.1} parent=5 // pred_check_branch
      %1627 = sbr.rel (%p1625) target = $region72
    $region71: #{context_guided_forward.1} parent=5 // pred_region
      %s1628 = ssub.s32 %s17, 2
      // Predicated region
      $region73: #{context_guided_forward.1} parent=71 // pred_check
        %p1629 = pneg %p282
      $region74: #{context_guided_forward.1} parent=71 // pred_check_branch
        %1631 = sbr.rel (%p1629) target = $region76
      $region75: #{context_guided_forward.1} parent=71 // pred_region
        %p1632 = scmp.lt.s32.totalorder %s23, 1
        %s1633 = scalar_select %p1632, %s23, 1
        %s1634 = smul.addr %s1633, 8
        %s1635 = smul.addr %s1634, 8
        %s1636 = scalar_lea.vmem %s11, %s1635
      $region76: #{context_guided_forward.1} parent=71 // pred_fallthru
        _
    $region72: #{context_guided_forward.1} parent=5 // pred_fallthru
      _
  $region6: #{context_guided_forward.1} parent=0 // loop_footer
    %s21 = sadd.s32 1, %s17
  $region7: #{context_guided_forward.1} parent=0 // loop_footer_branch
    %16 = sbr.rel target = $region3
  $region8: #{context_guided_forward.1} parent=0 // loop_exit
    _

</llo_original>
